<compile_context>
chip_gen: v5e
topology: v5e:2x2
jax: 0.10.0
libtpu: 0.0.40
codegen_flags: <defaults>
</compile_context>

<pallas_src>
import functools

import jax
import jax.numpy as jnp
from jax import lax
from jax.experimental import pallas as pl
from jax.experimental.pallas import tpu as pltpu


def _batch_tile(B):
    # Batch rows are independent.  Tile by 8 when possible (sublane-aligned block
    # second-to-last dims, parallel grid for megacore); otherwise run the whole
    # batch in one program.
    return 8 if (B % 8 == 0 and B > 8) else B


def _unroll_for(T):
    for u in (8, 4, 2):
        if T % u == 0:
            return u
    return 1


# ----------------------------------------------------------------------------
# Conv block kernel: Conv2d(k,k,'same') + BatchNorm(eval) + GLU + AvgPool(PF,PT).
# The last block additionally fuses the mean over frequency and writes the
# result time-major (T, B, C) for the GRU.
# Grid: one program per batch tile (parallel -> sharded across TCs on v7x).
# ----------------------------------------------------------------------------
def conv_block_kernel(x_ref, w_ref, bias_ref, scale_ref, shift_ref, gw_ref, gb_ref,
                      o_ref, xpad_scr, *, Bb, F, T, KH, KW, PF, PT, freq_mean):
    Cin = x_ref.shape[-1]
    Cout = gw_ref.shape[-1]
    ph, pw = KH // 2, KW // 2

    # 'same' padding built in VMEM: zero only the halo (the interior is fully
    # overwritten every grid step, so this stays correct under megacore splits).
    if ph > 0:
        zrow = jnp.zeros((Bb, ph, T + 2 * pw, Cin), jnp.float32)
        xpad_scr[:, 0:ph, :, :] = zrow
        xpad_scr[:, ph + F:ph + F + ph, :, :] = zrow
    if pw > 0:
        zcol = jnp.zeros((Bb, F, pw, Cin), jnp.float32)
        xpad_scr[:, ph:ph + F, 0:pw, :] = zcol
        xpad_scr[:, ph:ph + F, pw + T:pw + T + pw, :] = zcol
    xpad_scr[:, ph:ph + F, pw:pw + T, :] = x_ref[...]

    # im2col: a single (Bb*F*T, KH*KW*Cin) @ (KH*KW*Cin, Cout) MXU matmul
    # (bf16 operands, f32 accumulation) instead of KH*KW per-tap contractions.
    cols = []
    for kh in range(KH):
        for kw in range(KW):
            cols.append(xpad_scr[:, kh:kh + F, kw:kw + T, :].reshape(Bb * F * T, Cin))
    col = jnp.concatenate(cols, axis=-1).astype(jnp.bfloat16)
    conv = jnp.dot(col, w_ref[...], preferred_element_type=jnp.float32) + bias_ref[...]

    # BatchNorm2d (inference): running stats folded into scale/shift.
    bn = conv * scale_ref[...] + shift_ref[...]

    # GLU (module's custom GLU): Conv2d(C, C, 1)(bn) * sigmoid(bn).
    lin = jnp.dot(bn.astype(jnp.bfloat16), gw_ref[...],
                  preferred_element_type=jnp.float32) + gb_ref[...]
    glu = (lin * jax.nn.sigmoid(bn)).reshape(Bb, F, T, Cout)

    # Dropout = identity (eval).  AvgPool2d((PF, PT)).
    if PT == 1:
        pooled = jnp.mean(glu.reshape(Bb, F // PF, PF, T, Cout), axis=2)
    else:
        pooled = jnp.mean(glu.reshape(Bb, F // PF, PF, T // PT, PT, Cout), axis=(2, 4))

    if freq_mean:
        # x.mean(dim=2) of the PyTorch model fused here; output is written
        # time-major (T, Bb, C) so the GRU consumes it with no XLA transpose.
        pm = jnp.mean(pooled, axis=1)                  # (Bb, out_T, Cout)
        for b in range(Bb):                            # static, tiny
            o_ref[:, b, :] = pm[b]
    else:
        o_ref[...] = pooled


def conv_block(x, params, pooling, freq_mean=False):
    # x: (B, F, T, Cin), channels-last.
    B, F, T, Cin = x.shape
    w, bias, scale, shift, gw, gb = params
    KH, KW, _, Cout = w.shape
    PF, PT = pooling
    ph, pw = KH // 2, KW // 2

    w_flat = w.reshape(KH * KW * Cin, Cout).astype(jnp.bfloat16)
    gw_bf = gw.astype(jnp.bfloat16)

    out_F = F // PF
    out_T = T // PT
    Bb = _batch_tile(B)
    grid = (B // Bb,)

    kernel = functools.partial(conv_block_kernel, Bb=Bb, F=F, T=T, KH=KH, KW=KW,
                               PF=PF, PT=PT, freq_mean=freq_mean)

    if freq_mean:
        out_shape = jax.ShapeDtypeStruct((out_T, B, Cout), jnp.float32)
        out_spec = pl.BlockSpec((out_T, Bb, Cout), lambda b: (0, b, 0))
    else:
        out_shape = jax.ShapeDtypeStruct((B, out_F, out_T, Cout), jnp.float32)
        out_spec = pl.BlockSpec((Bb, out_F, out_T, Cout), lambda b: (b, 0, 0, 0))

    return pl.pallas_call(
        kernel,
        grid=grid,
        in_specs=[
            pl.BlockSpec((Bb, F, T, Cin), lambda b: (b, 0, 0, 0)),
            pl.BlockSpec(w_flat.shape, lambda b: (0, 0)),
            pl.BlockSpec(bias.shape, lambda b: (0, 0)),
            pl.BlockSpec(scale.shape, lambda b: (0, 0)),
            pl.BlockSpec(shift.shape, lambda b: (0, 0)),
            pl.BlockSpec(gw_bf.shape, lambda b: (0, 0)),
            pl.BlockSpec(gb.shape, lambda b: (0, 0)),
        ],
        out_specs=out_spec,
        out_shape=out_shape,
        scratch_shapes=[pltpu.VMEM((Bb, F + 2 * ph, T + 2 * pw, Cin), jnp.float32)],
        compiler_params=pltpu.CompilerParams(dimension_semantics=("parallel",)),
    )(x, w_flat, bias, scale, shift, gw_bf, gb)


# ----------------------------------------------------------------------------
# Fused bidirectional GRU layer (PyTorch GRU cell equations), time-major input.
# The input projections of both directions for all timesteps are hoisted into one
# matmul; the time loop carries two (Bb,H)@(H,3H) recurrent matmuls (fwd/bwd).
# The last layer optionally fuses the linear head (lane-padded classes) so the
# hidden sequence never leaves VMEM.
# ----------------------------------------------------------------------------
def bigru_layer_kernel(x_ref, wih_ref, whh_f_ref, whh_b_ref, bi_ref,
                       bh_f_ref, bh_b_ref, *rest, T, Bb, H, fuse_head, unroll):
    if fuse_head:
        hw_ref, hb_ref, o_ref, h_scr, gi_scr = rest
    else:
        o_ref, gi_scr = rest
        h_scr = o_ref                 # unfused: hidden written straight to output
    Din = x_ref.shape[-1]

    # Hoisted input projections (both directions, all timesteps): one MXU matmul.
    x_flat = x_ref[...].reshape(T * Bb, Din).astype(jnp.bfloat16)
    gi = jnp.dot(x_flat, wih_ref[...], preferred_element_type=jnp.float32) + bi_ref[...]
    gi_scr[...] = gi.reshape(T, Bb, 6 * H)

    def step(t, carry):
        h_f, h_b = carry              # (Bb, H) each, f32
        rt = T - 1 - t
        gh_f = jnp.dot(h_f.astype(jnp.bfloat16), whh_f_ref[...],
                       preferred_element_type=jnp.float32) + bh_f_ref[...]
        gh_b = jnp.dot(h_b.astype(jnp.bfloat16), whh_b_ref[...],
                       preferred_element_type=jnp.float32) + bh_b_ref[...]
        gif = gi_scr[t]               # (Bb, 6H): fwd gates in cols [0, 3H)
        gib = gi_scr[rt]              # bwd gates in cols [3H, 6H)

        # forward direction
        r_f = jax.nn.sigmoid(gif[:, 0:H] + gh_f[:, 0:H])
        z_f = jax.nn.sigmoid(gif[:, H:2 * H] + gh_f[:, H:2 * H])
        n_f = jnp.tanh(gif[:, 2 * H:3 * H] + r_f * gh_f[:, 2 * H:3 * H])
        h_f = (1.0 - z_f) * n_f + z_f * h_f

        # backward direction
        r_b = jax.nn.sigmoid(gib[:, 3 * H:4 * H] + gh_b[:, 0:H])
        z_b = jax.nn.sigmoid(gib[:, 4 * H:5 * H] + gh_b[:, H:2 * H])
        n_b = jnp.tanh(gib[:, 5 * H:6 * H] + r_b * gh_b[:, 2 * H:3 * H])
        h_b = (1.0 - z_b) * n_b + z_b * h_b

        h_scr[t, :, 0:H] = h_f
        h_scr[rt, :, H:2 * H] = h_b
        return (h_f, h_b)

    h0 = (jnp.zeros((Bb, H), jnp.float32), jnp.zeros((Bb, H), jnp.float32))
    lax.fori_loop(0, T, step, h0, unroll=unroll)

    if fuse_head:
        # Linear head fused into the epilogue: one lane-dense (T*Bb, 2H) @ (2H, Cp)
        # matmul; the (T, Bb, 2H) hidden sequence never hits HBM.
        Cp = hw_ref.shape[-1]
        h_seq = h_scr[...].reshape(T * Bb, 2 * H).astype(jnp.bfloat16)
        logits = jnp.dot(h_seq, hw_ref[...],
                         preferred_element_type=jnp.float32) + hb_ref[...]
        o_ref[...] = logits.reshape(T, Bb, Cp)


def bigru_layer(x_tm, layer, head=None):
    T, B, Din = x_tm.shape
    wih_p, whh_fp, whh_bp, bi_p, bh_fp, bh_bp = layer
    H = whh_fp.shape[0]
    Bb = _batch_tile(B)
    grid = (B // Bb,)
    fuse_head = head is not None

    kernel = functools.partial(bigru_layer_kernel, T=T, Bb=Bb, H=H,
                               fuse_head=fuse_head, unroll=_unroll_for(T))

    in_specs = [
        pl.BlockSpec((T, Bb, Din), lambda b: (0, b, 0)),
        pl.BlockSpec(wih_p.shape, lambda b: (0, 0)),
        pl.BlockSpec(whh_fp.shape, lambda b: (0, 0)),
        pl.BlockSpec(whh_bp.shape, lambda b: (0, 0)),
        pl.BlockSpec(bi_p.shape, lambda b: (0, 0)),
        pl.BlockSpec(bh_fp.shape, lambda b: (0, 0)),
        pl.BlockSpec(bh_bp.shape, lambda b: (0, 0)),
    ]
    operands = [x_tm, wih_p, whh_fp, whh_bp, bi_p, bh_fp, bh_bp]
    scratch = [pltpu.VMEM((T, Bb, 6 * H), jnp.float32)]

    if fuse_head:
        hw_p, hb_p = head
        Cp = hw_p.shape[-1]
        in_specs += [pl.BlockSpec(hw_p.shape, lambda b: (0, 0)),
                     pl.BlockSpec(hb_p.shape, lambda b: (0, 0))]
        operands += [hw_p, hb_p]
        out_shape = jax.ShapeDtypeStruct((T, B, Cp), jnp.float32)
        out_spec = pl.BlockSpec((T, Bb, Cp), lambda b: (0, b, 0))
        scratch = [pltpu.VMEM((T, Bb, 2 * H), jnp.float32)] + scratch
    else:
        out_shape = jax.ShapeDtypeStruct((T, B, 2 * H), jnp.float32)
        out_spec = pl.BlockSpec((T, Bb, 2 * H), lambda b: (0, b, 0))

    return pl.pallas_call(
        kernel,
        grid=grid,
        in_specs=in_specs,
        out_specs=out_spec,
        out_shape=out_shape,
        scratch_shapes=scratch,
        compiler_params=pltpu.CompilerParams(
            dimension_semantics=("parallel",),
            vmem_limit_bytes=64 * 1024 * 1024),
    )(*operands)


# ----------------------------------------------------------------------------
# Full forward pass.
# ----------------------------------------------------------------------------
def crnn_forward(x, cnn_params, gru_params, head_params, poolings, n_classes):
    # x: (B, F, T).  SpecAugment with 0 masks -> identity.  unsqueeze(1) -> channels.
    h = x[..., None]                                          # (B, F, T, 1)
    n_blocks = len(cnn_params)
    for i, p in enumerate(cnn_params):
        h = conv_block(h, p, poolings[i], freq_mean=(i == n_blocks - 1))
    # h is now time-major (T, B, C): frequency mean + transpose fused in-kernel.
    for layer in gru_params[:-1]:
        h = bigru_layer(h, layer)                             # (T, B, 2H)
    logits = bigru_layer(h, gru_params[-1], head=head_params) # (T, B, Cp)
    # Tiny epilogue in XLA: drop lane padding, back to batch-major.
    return jnp.transpose(logits[:, :, :n_classes], (1, 0, 2)) # (B, T, n_classes)


# ----------------------------------------------------------------------------
# Parameter packing / deterministic synthetic construction.
# ----------------------------------------------------------------------------
def pack_bigru_layer(fwd, bwd, H):
    """fwd/bwd = (wih (3,Din,H), whh (3,H,H), bih (3,H), bhh (3,H)), gate order (r,z,n)."""
    def pack_ih(wih):                       # (3, Din, H) -> (Din, 3H)
        return jnp.transpose(wih, (1, 0, 2)).reshape(wih.shape[1], 3 * H)

    def pack_hh(whh):                       # (3, H, H) -> (H, 3H)
        return jnp.transpose(whh, (1, 0, 2)).reshape(H, 3 * H)

    wih_f, whh_f, bih_f, bhh_f = fwd
    wih_b, whh_b, bih_b, bhh_b = bwd
    wih_p = jnp.concatenate([pack_ih(wih_f), pack_ih(wih_b)],
                            axis=1).astype(jnp.bfloat16)          # (Din, 6H)
    whh_fp = pack_hh(whh_f).astype(jnp.bfloat16)                  # (H, 3H)
    whh_bp = pack_hh(whh_b).astype(jnp.bfloat16)                  # (H, 3H)
    bi_p = jnp.concatenate([bih_f.reshape(1, 3 * H), bih_b.reshape(1, 3 * H)], axis=1)
    bh_fp = bhh_f.reshape(1, 3 * H)
    bh_bp = bhh_b.reshape(1, 3 * H)
    return wih_p, whh_fp, whh_bp, bi_p, bh_fp, bh_bp


def pack_head(hw, hb, n_classes):
    # Lane-pad the class dimension to a multiple of 128 (dense vst stores inside
    # the fused kernel); padding is sliced off outside.
    Cp = 128 * pl.cdiv(n_classes, 128)
    hw_p = jnp.zeros((hw.shape[0], Cp), jnp.float32).at[:, :n_classes].set(hw)
    hb_p = jnp.zeros((1, Cp), jnp.float32).at[:, :n_classes].set(hb.reshape(1, -1))
    return hw_p.astype(jnp.bfloat16), hb_p


def init_params(key, dims, kernel_sizes, d_rnn, n_rnn_layers, n_classes):
    keys = iter(jax.random.split(key, 128))
    chans = [1] + dims

    cnn = []
    for i in range(len(dims)):
        cin, cout = chans[i], chans[i + 1]
        k = kernel_sizes[i]
        w = jax.random.normal(next(keys), (k, k, cin, cout), jnp.float32) * 0.2
        bias = jax.random.normal(next(keys), (1, cout), jnp.float32) * 0.1
        gamma = 1.0 + 0.1 * jax.random.normal(next(keys), (1, cout), jnp.float32)
        beta = 0.1 * jax.random.normal(next(keys), (1, cout), jnp.float32)
        rmean = 0.1 * jax.random.normal(next(keys), (1, cout), jnp.float32)
        rvar = 0.5 + 0.5 * jnp.abs(jax.random.normal(next(keys), (1, cout), jnp.float32))
        scale = gamma / jnp.sqrt(rvar + 1e-5)
        shift = beta - rmean * scale
        gw = jax.random.normal(next(keys), (cout, cout), jnp.float32) * 0.2
        gb = jax.random.normal(next(keys), (1, cout), jnp.float32) * 0.1
        cnn.append((w, bias, scale, shift, gw, gb))

    gru = []
    din = dims[-1]
    H = d_rnn
    for _layer in range(n_rnn_layers):
        def make_dir(din=din):
            wih = jax.random.normal(next(keys), (3, din, H), jnp.float32) * 0.2
            whh = jax.random.normal(next(keys), (3, H, H), jnp.float32) * 0.2
            bih = jax.random.normal(next(keys), (3, H), jnp.float32) * 0.1
            bhh = jax.random.normal(next(keys), (3, H), jnp.float32) * 0.1
            return wih, whh, bih, bhh
        gru.append(pack_bigru_layer(make_dir(), make_dir(), H))
        din = 2 * H

    hw = jax.random.normal(next(keys), (2 * d_rnn, n_classes), jnp.float32) * 0.2
    hb = jax.random.normal(next(keys), (n_classes,), jnp.float32) * 0.1
    return cnn, gru, pack_head(hw, hb, n_classes)


if __name__ == "__main__":
    # Small config consistent with CRNNConfig(dims=[8,16], d_rnn=32, n_rnn_layers=2, n_classes=4)
    B, F, T = 2, 16, 8
    dims = [8, 16]
    kernel_sizes = [3, 3]
    poolings = [(2, 1), (2, 1)]        # default CNN poolings (pool freq only)
    d_rnn = 32
    n_rnn_layers = 2
    n_classes = 4

    key = jax.random.PRNGKey(0)
    kx, kp = jax.random.split(key)
    x = jax.random.normal(kx, (B, F, T), jnp.float32)   # (batch, freq, time) spectrogram

    cnn_p, gru_p, head_p = init_params(kp, dims, kernel_sizes, d_rnn, n_rnn_layers, n_classes)

    out = crnn_forward(x, cnn_p, gru_p, head_p, poolings, n_classes)
    out = jax.block_until_ready(out)
    assert out.shape == (B, T, n_classes), out.shape
    assert bool(jnp.all(jnp.isfinite(out)))
    print("KERNEL_OK")
</pallas_src>

<mosaic_0001>
module attributes {stable_mosaic.version = 11 : i64} {
  func.func @conv_block_kernel(%arg0: i32, %arg1: memref<2x16x8x1xf32, #tpu.memory_space<vmem>>, %arg2: memref<9x8xbf16, #tpu.memory_space<vmem>>, %arg3: memref<1x8xf32, #tpu.memory_space<vmem>>, %arg4: memref<1x8xf32, #tpu.memory_space<vmem>>, %arg5: memref<1x8xf32, #tpu.memory_space<vmem>>, %arg6: memref<8x8xbf16, #tpu.memory_space<vmem>>, %arg7: memref<1x8xf32, #tpu.memory_space<vmem>>, %arg8: memref<2x8x8x8xf32, #tpu.memory_space<vmem>>, %arg9: memref<2x18x10x1xf32, #tpu.memory_space<vmem>>) attributes {dimension_semantics = [#tpu.dimension_semantics<parallel>], iteration_bounds = array<i64: 1>, scalar_prefetch = 0 : i64, scratch_operands = 1 : i64, tpu.core_type = #tpu.core_type<tc>, window_params = [{transform_indices = @transform_0, window_bounds = array<i64: 2, 16, 8, 1>}, {pipeline_mode = #tpu.pipeline_mode<synchronous>, transform_indices = @transform_1, window_bounds = array<i64: 9, 8>}, {pipeline_mode = #tpu.pipeline_mode<synchronous>, transform_indices = @transform_2, window_bounds = array<i64: 1, 8>}, {pipeline_mode = #tpu.pipeline_mode<synchronous>, transform_indices = @transform_3, window_bounds = array<i64: 1, 8>}, {pipeline_mode = #tpu.pipeline_mode<synchronous>, transform_indices = @transform_4, window_bounds = array<i64: 1, 8>}, {pipeline_mode = #tpu.pipeline_mode<synchronous>, transform_indices = @transform_5, window_bounds = array<i64: 8, 8>}, {pipeline_mode = #tpu.pipeline_mode<synchronous>, transform_indices = @transform_6, window_bounds = array<i64: 1, 8>}, {transform_indices = @transform_7, window_bounds = array<i64: 2, 8, 8, 8>}]} {
    %cst = arith.constant 0.000000e+00 : f32
    %0 = vector.broadcast %cst : f32 to vector<2x1x10x1xf32>
    %c0 = arith.constant 0 : index
    %c0_0 = arith.constant 0 : index
    %c0_1 = arith.constant 0 : index
    %c0_2 = arith.constant 0 : index
    %1 = vector.load %arg9[%c0, %c0_0, %c0_1, %c0_2] : memref<2x18x10x1xf32, #tpu.memory_space<vmem>>, vector<2x1x10x1xf32>
    tpu.vector_store %arg9[%c0, %c0_0, %c0_1, %c0_2], %0 {strides = array<i32>} : memref<2x18x10x1xf32, #tpu.memory_space<vmem>>, vector<2x1x10x1xf32>,
    %c0_3 = arith.constant 0 : index
    %c17 = arith.constant 17 : index
    %c0_4 = arith.constant 0 : index
    %c0_5 = arith.constant 0 : index
    %2 = vector.load %arg9[%c0_3, %c17, %c0_4, %c0_5] : memref<2x18x10x1xf32, #tpu.memory_space<vmem>>, vector<2x1x10x1xf32>
    tpu.vector_store %arg9[%c0_3, %c17, %c0_4, %c0_5], %0 {strides = array<i32>} : memref<2x18x10x1xf32, #tpu.memory_space<vmem>>, vector<2x1x10x1xf32>,
    %cst_6 = arith.constant 0.000000e+00 : f32
    %3 = vector.broadcast %cst_6 : f32 to vector<2x16x1x1xf32>
    %c0_7 = arith.constant 0 : index
    %c1 = arith.constant 1 : index
    %c0_8 = arith.constant 0 : index
    %c0_9 = arith.constant 0 : index
    %4 = vector.load %arg9[%c0_7, %c1, %c0_8, %c0_9] : memref<2x18x10x1xf32, #tpu.memory_space<vmem>>, vector<2x16x1x1xf32>
    tpu.vector_store %arg9[%c0_7, %c1, %c0_8, %c0_9], %3 {strides = array<i32>} : memref<2x18x10x1xf32, #tpu.memory_space<vmem>>, vector<2x16x1x1xf32>,
    %c0_10 = arith.constant 0 : index
    %c1_11 = arith.constant 1 : index
    %c9 = arith.constant 9 : index
    %c0_12 = arith.constant 0 : index
    %5 = vector.load %arg9[%c0_10, %c1_11, %c9, %c0_12] : memref<2x18x10x1xf32, #tpu.memory_space<vmem>>, vector<2x16x1x1xf32>
    tpu.vector_store %arg9[%c0_10, %c1_11, %c9, %c0_12], %3 {strides = array<i32>} : memref<2x18x10x1xf32, #tpu.memory_space<vmem>>, vector<2x16x1x1xf32>,
    %c0_13 = arith.constant 0 : index
    %c0_14 = arith.constant 0 : index
    %c0_15 = arith.constant 0 : index
    %c0_16 = arith.constant 0 : index
    %6 = vector.load %arg1[%c0_13, %c0_14, %c0_15, %c0_16] : memref<2x16x8x1xf32, #tpu.memory_space<vmem>>, vector<2x16x8x1xf32>
    %c0_17 = arith.constant 0 : index
    %c1_18 = arith.constant 1 : index
    %c1_19 = arith.constant 1 : index
    %c0_20 = arith.constant 0 : index
    %7 = vector.load %arg9[%c0_17, %c1_18, %c1_19, %c0_20] : memref<2x18x10x1xf32, #tpu.memory_space<vmem>>, vector<2x16x8x1xf32>
    tpu.vector_store %arg9[%c0_17, %c1_18, %c1_19, %c0_20], %6 {strides = array<i32>} : memref<2x18x10x1xf32, #tpu.memory_space<vmem>>, vector<2x16x8x1xf32>,
    %c0_21 = arith.constant 0 : index
    %c0_22 = arith.constant 0 : index
    %c0_23 = arith.constant 0 : index
    %c0_24 = arith.constant 0 : index
    %8 = vector.load %arg9[%c0_21, %c0_22, %c0_23, %c0_24] : memref<2x18x10x1xf32, #tpu.memory_space<vmem>>, vector<2x16x8x1xf32>
    %9 = vector.shape_cast %8 : vector<2x16x8x1xf32> to vector<256x1xf32>
    %c0_25 = arith.constant 0 : index
    %c0_26 = arith.constant 0 : index
    %c1_27 = arith.constant 1 : index
    %c0_28 = arith.constant 0 : index
    %10 = vector.load %arg9[%c0_25, %c0_26, %c1_27, %c0_28] : memref<2x18x10x1xf32, #tpu.memory_space<vmem>>, vector<2x16x8x1xf32>
    %11 = vector.shape_cast %10 : vector<2x16x8x1xf32> to vector<256x1xf32>
    %c0_29 = arith.constant 0 : index
    %c0_30 = arith.constant 0 : index
    %c2 = arith.constant 2 : index
    %c0_31 = arith.constant 0 : index
    %12 = vector.load %arg9[%c0_29, %c0_30, %c2, %c0_31] : memref<2x18x10x1xf32, #tpu.memory_space<vmem>>, vector<2x16x8x1xf32>
    %13 = vector.shape_cast %12 : vector<2x16x8x1xf32> to vector<256x1xf32>
    %c0_32 = arith.constant 0 : index
    %c1_33 = arith.constant 1 : index
    %c0_34 = arith.constant 0 : index
    %c0_35 = arith.constant 0 : index
    %14 = vector.load %arg9[%c0_32, %c1_33, %c0_34, %c0_35] : memref<2x18x10x1xf32, #tpu.memory_space<vmem>>, vector<2x16x8x1xf32>
    %15 = vector.shape_cast %14 : vector<2x16x8x1xf32> to vector<256x1xf32>
    %c0_36 = arith.constant 0 : index
    %c1_37 = arith.constant 1 : index
    %c1_38 = arith.constant 1 : index
    %c0_39 = arith.constant 0 : index
    %16 = vector.load %arg9[%c0_36, %c1_37, %c1_38, %c0_39] : memref<2x18x10x1xf32, #tpu.memory_space<vmem>>, vector<2x16x8x1xf32>
    %17 = vector.shape_cast %16 : vector<2x16x8x1xf32> to vector<256x1xf32>
    %c0_40 = arith.constant 0 : index
    %c1_41 = arith.constant 1 : index
    %c2_42 = arith.constant 2 : index
    %c0_43 = arith.constant 0 : index
    %18 = vector.load %arg9[%c0_40, %c1_41, %c2_42, %c0_43] : memref<2x18x10x1xf32, #tpu.memory_space<vmem>>, vector<2x16x8x1xf32>
    %19 = vector.shape_cast %18 : vector<2x16x8x1xf32> to vector<256x1xf32>
    %c0_44 = arith.constant 0 : index
    %c2_45 = arith.constant 2 : index
    %c0_46 = arith.constant 0 : index
    %c0_47 = arith.constant 0 : index
    %20 = vector.load %arg9[%c0_44, %c2_45, %c0_46, %c0_47] : memref<2x18x10x1xf32, #tpu.memory_space<vmem>>, vector<2x16x8x1xf32>
    %21 = vector.shape_cast %20 : vector<2x16x8x1xf32> to vector<256x1xf32>
    %c0_48 = arith.constant 0 : index
    %c2_49 = arith.constant 2 : index
    %c1_50 = arith.constant 1 : index
    %c0_51 = arith.constant 0 : index
    %22 = vector.load %arg9[%c0_48, %c2_49, %c1_50, %c0_51] : memref<2x18x10x1xf32, #tpu.memory_space<vmem>>, vector<2x16x8x1xf32>
    %23 = vector.shape_cast %22 : vector<2x16x8x1xf32> to vector<256x1xf32>
    %c0_52 = arith.constant 0 : index
    %c2_53 = arith.constant 2 : index
    %c2_54 = arith.constant 2 : index
    %c0_55 = arith.constant 0 : index
    %24 = vector.load %arg9[%c0_52, %c2_53, %c2_54, %c0_55] : memref<2x18x10x1xf32, #tpu.memory_space<vmem>>, vector<2x16x8x1xf32>
    %25 = vector.shape_cast %24 : vector<2x16x8x1xf32> to vector<256x1xf32>
    %26 = tpu.concatenate %9, %11, %13, %15, %17, %19, %21, %23, %25 in 1 : vector<256x1xf32>, vector<256x1xf32>, vector<256x1xf32>, vector<256x1xf32>, vector<256x1xf32>, vector<256x1xf32>, vector<256x1xf32>, vector<256x1xf32>, vector<256x1xf32> -> vector<256x9xf32>
    %27 = arith.truncf %26 : vector<256x9xf32> to vector<256x9xbf16>
    %c0_56 = arith.constant 0 : index
    %c0_57 = arith.constant 0 : index
    %28 = vector.load %arg2[%c0_56, %c0_57] : memref<9x8xbf16, #tpu.memory_space<vmem>>, vector<9x8xbf16>
    %cst_58 = arith.constant dense<0.000000e+00> : vector<256x8xf32>
    %29 = tpu.matmul %27, %28, %cst_58 {dimension_numbers = #tpu.dot_dimension_numbers<[1], [0], [0], [1], [0, 0, 1, 1], [], []>} : vector<256x9xbf16>, vector<9x8xbf16>, vector<256x8xf32> -> vector<256x8xf32>
    %c0_59 = arith.constant 0 : index
    %c0_60 = arith.constant 0 : index
    %30 = vector.load %arg3[%c0_59, %c0_60] : memref<1x8xf32, #tpu.memory_space<vmem>>, vector<1x8xf32>
    %31 = vector.broadcast %30 : vector<1x8xf32> to vector<256x8xf32>
    %32 = arith.addf %29, %31 : vector<256x8xf32>
    %c0_61 = arith.constant 0 : index
    %c0_62 = arith.constant 0 : index
    %33 = vector.load %arg4[%c0_61, %c0_62] : memref<1x8xf32, #tpu.memory_space<vmem>>, vector<1x8xf32>
    %34 = vector.broadcast %33 : vector<1x8xf32> to vector<256x8xf32>
    %35 = arith.mulf %32, %34 : vector<256x8xf32>
    %c0_63 = arith.constant 0 : index
    %c0_64 = arith.constant 0 : index
    %36 = vector.load %arg5[%c0_63, %c0_64] : memref<1x8xf32, #tpu.memory_space<vmem>>, vector<1x8xf32>
    %37 = vector.broadcast %36 : vector<1x8xf32> to vector<256x8xf32>
    %38 = arith.addf %35, %37 : vector<256x8xf32>
    %39 = arith.truncf %38 : vector<256x8xf32> to vector<256x8xbf16>
    %c0_65 = arith.constant 0 : index
    %c0_66 = arith.constant 0 : index
    %40 = vector.load %arg6[%c0_65, %c0_66] : memref<8x8xbf16, #tpu.memory_space<vmem>>, vector<8x8xbf16>
    %cst_67 = arith.constant dense<0.000000e+00> : vector<256x8xf32>
    %41 = tpu.matmul %39, %40, %cst_67 {dimension_numbers = #tpu.dot_dimension_numbers<[1], [0], [0], [1], [0, 0, 1, 1], [], []>} : vector<256x8xbf16>, vector<8x8xbf16>, vector<256x8xf32> -> vector<256x8xf32>
    %c0_68 = arith.constant 0 : index
    %c0_69 = arith.constant 0 : index
    %42 = vector.load %arg7[%c0_68, %c0_69] : memref<1x8xf32, #tpu.memory_space<vmem>>, vector<1x8xf32>
    %43 = vector.broadcast %42 : vector<1x8xf32> to vector<256x8xf32>
    %44 = arith.addf %41, %43 : vector<256x8xf32>
    %45 = arith.negf %38 : vector<256x8xf32>
    %46 = math.exp %45 : vector<256x8xf32>
    %cst_70 = arith.constant 1.000000e+00 : f32
    %47 = vector.broadcast %cst_70 : f32 to vector<256x8xf32>
    %48 = arith.addf %47, %46 : vector<256x8xf32>
    %49 = arith.divf %47, %48 : vector<256x8xf32>
    %50 = arith.mulf %44, %49 : vector<256x8xf32>
    %51 = vector.shape_cast %50 : vector<256x8xf32> to vector<2x16x8x8xf32>
    %52 = vector.shape_cast %51 : vector<2x16x8x8xf32> to vector<2x8x2x8x8xf32>
    %cst_71 = arith.constant dense<0.000000e+00> : vector<2x8x8x8xf32>
    %53 = vector.multi_reduction <add>, %52, %cst_71 [2] : vector<2x8x2x8x8xf32> to vector<2x8x8x8xf32>
    %cst_72 = arith.constant 2.000000e+00 : f32
    %54 = vector.broadcast %cst_72 : f32 to vector<2x8x8x8xf32>
    %55 = arith.divf %53, %54 : vector<2x8x8x8xf32>
    %c0_73 = arith.constant 0 : index
    %c0_74 = arith.constant 0 : index
    %c0_75 = arith.constant 0 : index
    %c0_76 = arith.constant 0 : index
    %56 = vector.load %arg8[%c0_73, %c0_74, %c0_75, %c0_76] : memref<2x8x8x8xf32, #tpu.memory_space<vmem>>, vector<2x8x8x8xf32>
    tpu.vector_store %arg8[%c0_73, %c0_74, %c0_75, %c0_76], %55 {strides = array<i32>} : memref<2x8x8x8xf32, #tpu.memory_space<vmem>>, vector<2x8x8x8xf32>,
    return
  }
  func.func @transform_0(%arg0: i32) -> (i32, i32, i32, i32) {
    %c0_i32 = arith.constant 0 : i32
    %c0_i32_0 = arith.constant 0 : i32
    %c0_i32_1 = arith.constant 0 : i32
    %c0_i32_2 = arith.constant 0 : i32
    return %arg0, %c0_i32, %c0_i32_0, %c0_i32_1 : i32, i32, i32, i32
  }
  func.func @transform_1(%arg0: i32) -> (i32, i32) {
    %c0_i32 = arith.constant 0 : i32
    %c0_i32_0 = arith.constant 0 : i32
    %c0_i32_1 = arith.constant 0 : i32
    return %c0_i32, %c0_i32_0 : i32, i32
  }
  func.func @transform_2(%arg0: i32) -> (i32, i32) {
    %c0_i32 = arith.constant 0 : i32
    %c0_i32_0 = arith.constant 0 : i32
    %c0_i32_1 = arith.constant 0 : i32
    return %c0_i32, %c0_i32_0 : i32, i32
  }
  func.func @transform_3(%arg0: i32) -> (i32, i32) {
    %c0_i32 = arith.constant 0 : i32
    %c0_i32_0 = arith.constant 0 : i32
    %c0_i32_1 = arith.constant 0 : i32
    return %c0_i32, %c0_i32_0 : i32, i32
  }
  func.func @transform_4(%arg0: i32) -> (i32, i32) {
    %c0_i32 = arith.constant 0 : i32
    %c0_i32_0 = arith.constant 0 : i32
    %c0_i32_1 = arith.constant 0 : i32
    return %c0_i32, %c0_i32_0 : i32, i32
  }
  func.func @transform_5(%arg0: i32) -> (i32, i32) {
    %c0_i32 = arith.constant 0 : i32
    %c0_i32_0 = arith.constant 0 : i32
    %c0_i32_1 = arith.constant 0 : i32
    return %c0_i32, %c0_i32_0 : i32, i32
  }
  func.func @transform_6(%arg0: i32) -> (i32, i32) {
    %c0_i32 = arith.constant 0 : i32
    %c0_i32_0 = arith.constant 0 : i32
    %c0_i32_1 = arith.constant 0 : i32
    return %c0_i32, %c0_i32_0 : i32, i32
  }
  func.func @transform_7(%arg0: i32) -> (i32, i32, i32, i32) {
    %c0_i32 = arith.constant 0 : i32
    %c0_i32_0 = arith.constant 0 : i32
    %c0_i32_1 = arith.constant 0 : i32
    %c0_i32_2 = arith.constant 0 : i32
    return %arg0, %c0_i32, %c0_i32_0, %c0_i32_1 : i32, i32, i32, i32
  }
}

</mosaic_0001>

<llo_original>
// kernel: tpu_custom_call.1
$region0: #{tpu_custom_call.1}
  #allocation0 [shape = 'u32[]', space=smem, size = 0x4, offset = 0x4, fixed_abs, tag = 'smem constant byte address 0x4 - core index']
  #allocation1 [shape = 'u32[72,128]{1,0:T(1,128)}', space=vmem, size = 0x9000, scoped, tag = 'internal scratch']
  #allocation2 [shape = 'f32[2,18,10,1]{3,2,1,0:T(8,128)}', space=vmem, size = 0x48000, scoped, tag = 'scratch operand']
  %s0 = inlined_call_operand.vmem [shape: f32[2,16,8,1], index: 0, kind: input, shape index: {}]
  %s1 = inlined_call_operand.vmem [shape: bf16[9,8], index: 1, kind: input, shape index: {}]
  %s2 = inlined_call_operand.vmem [shape: f32[1,8], index: 2, kind: input, shape index: {}]
  %s3 = inlined_call_operand.vmem [shape: f32[1,8], index: 3, kind: input, shape index: {}]
  %s4 = inlined_call_operand.vmem [shape: f32[1,8], index: 4, kind: input, shape index: {}]
  %s5 = inlined_call_operand.vmem [shape: bf16[8,8], index: 5, kind: input, shape index: {}]
  %s6 = inlined_call_operand.vmem [shape: f32[1,8], index: 6, kind: input, shape index: {}]
  %s7 = inlined_call_operand.hbm [shape: f32[2,8,8,8], index: 7, kind: output, shape index: {}]
  %s8 = sld [smem:[#allocation0]]
  $region38: #{tpu_custom_call.1} parent=0
    _
  %s10 = ssub.s32 1, %s8
  %s11 = scalar_select 0, %s10, %s8
  $region1: #{tpu_custom_call.1} parent=0
    #allocation3 [shape = 'u8[65536]{0}', space=vmem, size = 0x10000, scoped, tag = 'output window, operand 0, single buffered']
    #allocation4 [shape = 's32[1]{0}', space=sflag, size = 0x4, scoped, tag = 'scoped memory for tpu_custom_call.1']
    %12 = vsyncpa [#allocation4], 0
    // Predicated region
    $region2: #{tpu_custom_call.1} parent=1 // pred_check
      _
    $region3: #{tpu_custom_call.1} parent=1 // pred_check_branch
      %14 = sbr.rel (0) target = $region5
    $region4: #{tpu_custom_call.1} parent=1 // pred_region
      _
    $region5: #{tpu_custom_call.1} parent=1 // pred_fallthru
      _
    // Predicated region
    $region6: #{tpu_custom_call.1} parent=1 // pred_check
      _
    $region7: #{tpu_custom_call.1} parent=1 // pred_check_branch
      %16 = sbr.rel (0) target = $region9
    $region8: #{tpu_custom_call.1} parent=1 // pred_region
      _
    $region9: #{tpu_custom_call.1} parent=1 // pred_fallthru
      _
    // Predicated region
    $region10: #{tpu_custom_call.1} parent=1 // pred_check
      _
    $region11: #{tpu_custom_call.1} parent=1 // pred_check_branch
      %18 = sbr.rel (0) target = $region13
    $region12: #{tpu_custom_call.1} parent=1 // pred_region
      _
    $region13: #{tpu_custom_call.1} parent=1 // pred_fallthru
      _
    // Predicated region
    $region14: #{tpu_custom_call.1} parent=1 // pred_check
      _
    $region15: #{tpu_custom_call.1} parent=1 // pred_check_branch
      %20 = sbr.rel (0) target = $region17
    $region16: #{tpu_custom_call.1} parent=1 // pred_region
      _
    $region17: #{tpu_custom_call.1} parent=1 // pred_fallthru
      _
    // Predicated region
    $region18: #{tpu_custom_call.1} parent=1 // pred_check
      _
    $region19: #{tpu_custom_call.1} parent=1 // pred_check_branch
      %22 = sbr.rel (0) target = $region21
    $region20: #{tpu_custom_call.1} parent=1 // pred_region
      _
    $region21: #{tpu_custom_call.1} parent=1 // pred_fallthru
      _
    // Predicated region
    $region22: #{tpu_custom_call.1} parent=1 // pred_check
      _
    $region23: #{tpu_custom_call.1} parent=1 // pred_check_branch
      %24 = sbr.rel (0) target = $region25
    $region24: #{tpu_custom_call.1} parent=1 // pred_region
      _
    $region25: #{tpu_custom_call.1} parent=1 // pred_fallthru
      _
    // Predicated region
    $region26: #{tpu_custom_call.1} parent=1 // pred_check
      _
    $region27: #{tpu_custom_call.1} parent=1 // pred_check_branch
      %26 = sbr.rel (0) target = $region29
    $region28: #{tpu_custom_call.1} parent=1 // pred_region
      _
    $region29: #{tpu_custom_call.1} parent=1 // pred_fallthru
      _
    %vm28 = vcmask 7168
    %29 = vst.msk [vmem:[#allocation2] sm:$0xff] %vm28, 0.0
    %vm30 = vcmask 1024
    %31 = vst.msk [vmem:[#allocation2 + $0x8] sm:$0x3] %vm30, 0.0
    %32 = vst.msk [vmem:[#allocation2 + $0x120] sm:$0xff] %vm28, 0.0
    %33 = vst.msk [vmem:[#allocation2 + $0x128] sm:$0x3] %vm30, 0.0
    %s34 = scalar_lea.vmem [#allocation2], 272
    %35 = vst.msk [vmem:[%s34] sm:$0xff] %vm28, 0.0
    %36 = vst.msk [vmem:[%s34 + $0x8] sm:$0x3] %vm30, 0.0
    %37 = vst.msk [vmem:[%s34 + $0x120] sm:$0xff] %vm28, 0.0
    %38 = vst.msk [vmem:[%s34 + $0x128] sm:$0x3] %vm30, 0.0
    %s39 = scalar_lea.vmem [#allocation2], 16
    %vm40 = vcmask 0
    %41 = vst.msk [vmem:[%s39] sm:$0x1] %vm40, 0.0
    %42 = vst.msk [vmem:[%s39 + $0x10] sm:$0x1] %vm40, 0.0
    %43 = vst.msk [vmem:[%s39 + $0x20] sm:$0x1] %vm40, 0.0
    %44 = vst.msk [vmem:[%s39 + $0x30] sm:$0x1] %vm40, 0.0
    %45 = vst.msk [vmem:[%s39 + $0x40] sm:$0x1] %vm40, 0.0
    %46 = vst.msk [vmem:[%s39 + $0x50] sm:$0x1] %vm40, 0.0
    %47 = vst.msk [vmem:[%s39 + $0x60] sm:$0x1] %vm40, 0.0
    %48 = vst.msk [vmem:[%s39 + $0x70] sm:$0x1] %vm40, 0.0
    %49 = vst.msk [vmem:[%s39 + $0x80] sm:$0x1] %vm40, 0.0
    %50 = vst.msk [vmem:[%s39 + $0x90] sm:$0x1] %vm40, 0.0
    %51 = vst.msk [vmem:[%s39 + $0xa0] sm:$0x1] %vm40, 0.0
    %52 = vst.msk [vmem:[%s39 + $0xb0] sm:$0x1] %vm40, 0.0
    %53 = vst.msk [vmem:[%s39 + $0xc0] sm:$0x1] %vm40, 0.0
    %54 = vst.msk [vmem:[%s39 + $0xd0] sm:$0x1] %vm40, 0.0
    %55 = vst.msk [vmem:[%s39 + $0xe0] sm:$0x1] %vm40, 0.0
    %56 = vst.msk [vmem:[%s39 + $0xf0] sm:$0x1] %vm40, 0.0
    %57 = vst.msk [vmem:[%s39 + $0x120] sm:$0x1] %vm40, 0.0
    %58 = vst.msk [vmem:[%s39 + $0x130] sm:$0x1] %vm40, 0.0
    %59 = vst.msk [vmem:[%s39 + $0x140] sm:$0x1] %vm40, 0.0
    %60 = vst.msk [vmem:[%s39 + $0x150] sm:$0x1] %vm40, 0.0
    %61 = vst.msk [vmem:[%s39 + $0x160] sm:$0x1] %vm40, 0.0
    %62 = vst.msk [vmem:[%s39 + $0x170] sm:$0x1] %vm40, 0.0
    %63 = vst.msk [vmem:[%s39 + $0x180] sm:$0x1] %vm40, 0.0
    %64 = vst.msk [vmem:[%s39 + $0x190] sm:$0x1] %vm40, 0.0
    %65 = vst.msk [vmem:[%s39 + $0x1a0] sm:$0x1] %vm40, 0.0
    %66 = vst.msk [vmem:[%s39 + $0x1b0] sm:$0x1] %vm40, 0.0
    %67 = vst.msk [vmem:[%s39 + $0x1c0] sm:$0x1] %vm40, 0.0
    %68 = vst.msk [vmem:[%s39 + $0x1d0] sm:$0x1] %vm40, 0.0
    %69 = vst.msk [vmem:[%s39 + $0x1e0] sm:$0x1] %vm40, 0.0
    %70 = vst.msk [vmem:[%s39 + $0x1f0] sm:$0x1] %vm40, 0.0
    %71 = vst.msk [vmem:[%s39 + $0x200] sm:$0x1] %vm40, 0.0
    %72 = vst.msk [vmem:[%s39 + $0x210] sm:$0x1] %vm40, 0.0
    %73 = vst.msk [vmem:[%s39 + $0x9] sm:$0x1] %vm40, 0.0
    %74 = vst.msk [vmem:[%s39 + $0x19] sm:$0x1] %vm40, 0.0
    %75 = vst.msk [vmem:[%s39 + $0x29] sm:$0x1] %vm40, 0.0
    %76 = vst.msk [vmem:[%s39 + $0x39] sm:$0x1] %vm40, 0.0
    %77 = vst.msk [vmem:[%s39 + $0x49] sm:$0x1] %vm40, 0.0
    %78 = vst.msk [vmem:[%s39 + $0x59] sm:$0x1] %vm40, 0.0
    %79 = vst.msk [vmem:[%s39 + $0x69] sm:$0x1] %vm40, 0.0
    %80 = vst.msk [vmem:[%s39 + $0x79] sm:$0x1] %vm40, 0.0
    %81 = vst.msk [vmem:[%s39 + $0x89] sm:$0x1] %vm40, 0.0
    %82 = vst.msk [vmem:[%s39 + $0x99] sm:$0x1] %vm40, 0.0
    %83 = vst.msk [vmem:[%s39 + $0xa9] sm:$0x1] %vm40, 0.0
    %84 = vst.msk [vmem:[%s39 + $0xb9] sm:$0x1] %vm40, 0.0
    %85 = vst.msk [vmem:[%s39 + $0xc9] sm:$0x1] %vm40, 0.0
    %86 = vst.msk [vmem:[%s39 + $0xd9] sm:$0x1] %vm40, 0.0
    %87 = vst.msk [vmem:[%s39 + $0xe9] sm:$0x1] %vm40, 0.0
    %88 = vst.msk [vmem:[%s39 + $0xf9] sm:$0x1] %vm40, 0.0
    %89 = vst.msk [vmem:[%s39 + $0x129] sm:$0x1] %vm40, 0.0
    %90 = vst.msk [vmem:[%s39 + $0x139] sm:$0x1] %vm40, 0.0
    %91 = vst.msk [vmem:[%s39 + $0x149] sm:$0x1] %vm40, 0.0
    %92 = vst.msk [vmem:[%s39 + $0x159] sm:$0x1] %vm40, 0.0
    %93 = vst.msk [vmem:[%s39 + $0x169] sm:$0x1] %vm40, 0.0
    %94 = vst.msk [vmem:[%s39 + $0x179] sm:$0x1] %vm40, 0.0
    %95 = vst.msk [vmem:[%s39 + $0x189] sm:$0x1] %vm40, 0.0
    %96 = vst.msk [vmem:[%s39 + $0x199] sm:$0x1] %vm40, 0.0
    %97 = vst.msk [vmem:[%s39 + $0x1a9] sm:$0x1] %vm40, 0.0
    %98 = vst.msk [vmem:[%s39 + $0x1b9] sm:$0x1] %vm40, 0.0
    %99 = vst.msk [vmem:[%s39 + $0x1c9] sm:$0x1] %vm40, 0.0
    %100 = vst.msk [vmem:[%s39 + $0x1d9] sm:$0x1] %vm40, 0.0
    %101 = vst.msk [vmem:[%s39 + $0x1e9] sm:$0x1] %vm40, 0.0
    %102 = vst.msk [vmem:[%s39 + $0x1f9] sm:$0x1] %vm40, 0.0
    %103 = vst.msk [vmem:[%s39 + $0x209] sm:$0x1] %vm40, 0.0
    %104 = vst.msk [vmem:[%s39 + $0x219] sm:$0x1] %vm40, 0.0
    %v105 = vld [vmem:[%s0] sm:$0xff]
    %v106 = vld [vmem:[%s0 + $0x8] sm:$0xff]
    %v107 = vld [vmem:[%s0 + $0x10] sm:$0xff]
    %v108 = vld [vmem:[%s0 + $0x18] sm:$0xff]
    %v109 = vld [vmem:[%s0 + $0x20] sm:$0xff]
    %v110 = vld [vmem:[%s0 + $0x28] sm:$0xff]
    %v111 = vld [vmem:[%s0 + $0x30] sm:$0xff]
    %v112 = vld [vmem:[%s0 + $0x38] sm:$0xff]
    %v113 = vld [vmem:[%s0 + $0x40] sm:$0xff]
    %v114 = vld [vmem:[%s0 + $0x48] sm:$0xff]
    %v115 = vld [vmem:[%s0 + $0x50] sm:$0xff]
    %v116 = vld [vmem:[%s0 + $0x58] sm:$0xff]
    %v117 = vld [vmem:[%s0 + $0x60] sm:$0xff]
    %v118 = vld [vmem:[%s0 + $0x68] sm:$0xff]
    %v119 = vld [vmem:[%s0 + $0x70] sm:$0xff]
    %v120 = vld [vmem:[%s0 + $0x78] sm:$0xff]
    %v121 = vld [vmem:[%s0 + $0x80] sm:$0xff]
    %v122 = vld [vmem:[%s0 + $0x88] sm:$0xff]
    %v123 = vld [vmem:[%s0 + $0x90] sm:$0xff]
    %v124 = vld [vmem:[%s0 + $0x98] sm:$0xff]
    %v125 = vld [vmem:[%s0 + $0xa0] sm:$0xff]
    %v126 = vld [vmem:[%s0 + $0xa8] sm:$0xff]
    %v127 = vld [vmem:[%s0 + $0xb0] sm:$0xff]
    %v128 = vld [vmem:[%s0 + $0xb8] sm:$0xff]
    %v129 = vld [vmem:[%s0 + $0xc0] sm:$0xff]
    %v130 = vld [vmem:[%s0 + $0xc8] sm:$0xff]
    %v131 = vld [vmem:[%s0 + $0xd0] sm:$0xff]
    %v132 = vld [vmem:[%s0 + $0xd8] sm:$0xff]
    %v133 = vld [vmem:[%s0 + $0xe0] sm:$0xff]
    %v134 = vld [vmem:[%s0 + $0xe8] sm:$0xff]
    %v135 = vld [vmem:[%s0 + $0xf0] sm:$0xff]
    %v136 = vld [vmem:[%s0 + $0xf8] sm:$0xff]
    %137 = vst.msk [vmem:[%s39 + $0x1] sm:$0xff] %vm28, %v105
    %138 = vst.msk [vmem:[%s39 + $0x11] sm:$0xff] %vm28, %v106
    %139 = vst.msk [vmem:[%s39 + $0x21] sm:$0xff] %vm28, %v107
    %140 = vst.msk [vmem:[%s39 + $0x31] sm:$0xff] %vm28, %v108
    %141 = vst.msk [vmem:[%s39 + $0x41] sm:$0xff] %vm28, %v109
    %142 = vst.msk [vmem:[%s39 + $0x51] sm:$0xff] %vm28, %v110
    %143 = vst.msk [vmem:[%s39 + $0x61] sm:$0xff] %vm28, %v111
    %144 = vst.msk [vmem:[%s39 + $0x71] sm:$0xff] %vm28, %v112
    %145 = vst.msk [vmem:[%s39 + $0x81] sm:$0xff] %vm28, %v113
    %146 = vst.msk [vmem:[%s39 + $0x91] sm:$0xff] %vm28, %v114
    %147 = vst.msk [vmem:[%s39 + $0xa1] sm:$0xff] %vm28, %v115
    %148 = vst.msk [vmem:[%s39 + $0xb1] sm:$0xff] %vm28, %v116
    %149 = vst.msk [vmem:[%s39 + $0xc1] sm:$0xff] %vm28, %v117
    %150 = vst.msk [vmem:[%s39 + $0xd1] sm:$0xff] %vm28, %v118
    %151 = vst.msk [vmem:[%s39 + $0xe1] sm:$0xff] %vm28, %v119
    %152 = vst.msk [vmem:[%s39 + $0xf1] sm:$0xff] %vm28, %v120
    %153 = vst.msk [vmem:[%s39 + $0x121] sm:$0xff] %vm28, %v121
    %154 = vst.msk [vmem:[%s39 + $0x131] sm:$0xff] %vm28, %v122
    %155 = vst.msk [vmem:[%s39 + $0x141] sm:$0xff] %vm28, %v123
    %156 = vst.msk [vmem:[%s39 + $0x151] sm:$0xff] %vm28, %v124
    %157 = vst.msk [vmem:[%s39 + $0x161] sm:$0xff] %vm28, %v125
    %158 = vst.msk [vmem:[%s39 + $0x171] sm:$0xff] %vm28, %v126
    %159 = vst.msk [vmem:[%s39 + $0x181] sm:$0xff] %vm28, %v127
    %160 = vst.msk [vmem:[%s39 + $0x191] sm:$0xff] %vm28, %v128
    %161 = vst.msk [vmem:[%s39 + $0x1a1] sm:$0xff] %vm28, %v129
    %162 = vst.msk [vmem:[%s39 + $0x1b1] sm:$0xff] %vm28, %v130
    %163 = vst.msk [vmem:[%s39 + $0x1c1] sm:$0xff] %vm28, %v131
    %164 = vst.msk [vmem:[%s39 + $0x1d1] sm:$0xff] %vm28, %v132
    %165 = vst.msk [vmem:[%s39 + $0x1e1] sm:$0xff] %vm28, %v133
    %166 = vst.msk [vmem:[%s39 + $0x1f1] sm:$0xff] %vm28, %v134
    %167 = vst.msk [vmem:[%s39 + $0x201] sm:$0xff] %vm28, %v135
    %168 = vst.msk [vmem:[%s39 + $0x211] sm:$0xff] %vm28, %v136
    %v169 = vld [vmem:[#allocation2] sm:$0xff]
    %v170 = vld [vmem:[#allocation2 + $0x10] sm:$0xff]
    %v171 = vld [vmem:[#allocation2 + $0x20] sm:$0xff]
    %v172 = vld [vmem:[#allocation2 + $0x30] sm:$0xff]
    %v173 = vld [vmem:[#allocation2 + $0x40] sm:$0xff]
    %v174 = vld [vmem:[#allocation2 + $0x50] sm:$0xff]
    %v175 = vld [vmem:[#allocation2 + $0x60] sm:$0xff]
    %v176 = vld [vmem:[#allocation2 + $0x70] sm:$0xff]
    %v177 = vld [vmem:[#allocation2 + $0x80] sm:$0xff]
    %v178 = vld [vmem:[#allocation2 + $0x90] sm:$0xff]
    %v179 = vld [vmem:[#allocation2 + $0xa0] sm:$0xff]
    %v180 = vld [vmem:[#allocation2 + $0xb0] sm:$0xff]
    %v181 = vld [vmem:[#allocation2 + $0xc0] sm:$0xff]
    %v182 = vld [vmem:[#allocation2 + $0xd0] sm:$0xff]
    %v183 = vld [vmem:[#allocation2 + $0xe0] sm:$0xff]
    %v184 = vld [vmem:[#allocation2 + $0xf0] sm:$0xff]
    %v185 = vld [vmem:[#allocation2 + $0x120] sm:$0xff]
    %v186 = vld [vmem:[#allocation2 + $0x130] sm:$0xff]
    %v187 = vld [vmem:[#allocation2 + $0x140] sm:$0xff]
    %v188 = vld [vmem:[#allocation2 + $0x150] sm:$0xff]
    %v189 = vld [vmem:[#allocation2 + $0x160] sm:$0xff]
    %v190 = vld [vmem:[#allocation2 + $0x170] sm:$0xff]
    %v191 = vld [vmem:[#allocation2 + $0x180] sm:$0xff]
    %v192 = vld [vmem:[#allocation2 + $0x190] sm:$0xff]
    %v193 = vld [vmem:[#allocation2 + $0x1a0] sm:$0xff]
    %v194 = vld [vmem:[#allocation2 + $0x1b0] sm:$0xff]
    %v195 = vld [vmem:[#allocation2 + $0x1c0] sm:$0xff]
    %v196 = vld [vmem:[#allocation2 + $0x1d0] sm:$0xff]
    %v197 = vld [vmem:[#allocation2 + $0x1e0] sm:$0xff]
    %v198 = vld [vmem:[#allocation2 + $0x1f0] sm:$0xff]
    %v199 = vld [vmem:[#allocation2 + $0x200] sm:$0xff]
    %v200 = vld [vmem:[#allocation2 + $0x210] sm:$0xff]
    %v201 = vld [vmem:[#allocation2 + $0x1] sm:$0xff]
    %v202 = vld [vmem:[#allocation2 + $0x11] sm:$0xff]
    %v203 = vld [vmem:[#allocation2 + $0x21] sm:$0xff]
    %v204 = vld [vmem:[#allocation2 + $0x31] sm:$0xff]
    %v205 = vld [vmem:[#allocation2 + $0x41] sm:$0xff]
    %v206 = vld [vmem:[#allocation2 + $0x51] sm:$0xff]
    %v207 = vld [vmem:[#allocation2 + $0x61] sm:$0xff]
    %v208 = vld [vmem:[#allocation2 + $0x71] sm:$0xff]
    %v209 = vld [vmem:[#allocation2 + $0x81] sm:$0xff]
    %v210 = vld [vmem:[#allocation2 + $0x91] sm:$0xff]
    %v211 = vld [vmem:[#allocation2 + $0xa1] sm:$0xff]
    %v212 = vld [vmem:[#allocation2 + $0xb1] sm:$0xff]
    %v213 = vld [vmem:[#allocation2 + $0xc1] sm:$0xff]
    %v214 = vld [vmem:[#allocation2 + $0xd1] sm:$0xff]
    %v215 = vld [vmem:[#allocation2 + $0xe1] sm:$0xff]
    %v216 = vld [vmem:[#allocation2 + $0xf1] sm:$0xff]
    %v217 = vld [vmem:[#allocation2 + $0x121] sm:$0xff]
    %v218 = vld [vmem:[#allocation2 + $0x131] sm:$0xff]
    %v219 = vld [vmem:[#allocation2 + $0x141] sm:$0xff]
    %v220 = vld [vmem:[#allocation2 + $0x151] sm:$0xff]
    %v221 = vld [vmem:[#allocation2 + $0x161] sm:$0xff]
    %v222 = vld [vmem:[#allocation2 + $0x171] sm:$0xff]
    %v223 = vld [vmem:[#allocation2 + $0x181] sm:$0xff]
    %v224 = vld [vmem:[#allocation2 + $0x191] sm:$0xff]
    %v225 = vld [vmem:[#allocation2 + $0x1a1] sm:$0xff]
    %v226 = vld [vmem:[#allocation2 + $0x1b1] sm:$0xff]
    %v227 = vld [vmem:[#allocation2 + $0x1c1] sm:$0xff]
    %v228 = vld [vmem:[#allocation2 + $0x1d1] sm:$0xff]
    %v229 = vld [vmem:[#allocation2 + $0x1e1] sm:$0xff]
    %v230 = vld [vmem:[#allocation2 + $0x1f1] sm:$0xff]
    %v231 = vld [vmem:[#allocation2 + $0x201] sm:$0xff]
    %v232 = vld [vmem:[#allocation2 + $0x211] sm:$0xff]
    %v233 = vld [vmem:[#allocation2 + $0x2] sm:$0xff]
    %v234 = vld [vmem:[#allocation2 + $0x12] sm:$0xff]
    %v235 = vld [vmem:[#allocation2 + $0x22] sm:$0xff]
    %v236 = vld [vmem:[#allocation2 + $0x32] sm:$0xff]
    %v237 = vld [vmem:[#allocation2 + $0x42] sm:$0xff]
    %v238 = vld [vmem:[#allocation2 + $0x52] sm:$0xff]
    %v239 = vld [vmem:[#allocation2 + $0x62] sm:$0xff]
    %v240 = vld [vmem:[#allocation2 + $0x72] sm:$0xff]
    %v241 = vld [vmem:[#allocation2 + $0x82] sm:$0xff]
    %v242 = vld [vmem:[#allocation2 + $0x92] sm:$0xff]
    %v243 = vld [vmem:[#allocation2 + $0xa2] sm:$0xff]
    %v244 = vld [vmem:[#allocation2 + $0xb2] sm:$0xff]
    %v245 = vld [vmem:[#allocation2 + $0xc2] sm:$0xff]
    %v246 = vld [vmem:[#allocation2 + $0xd2] sm:$0xff]
    %v247 = vld [vmem:[#allocation2 + $0xe2] sm:$0xff]
    %v248 = vld [vmem:[#allocation2 + $0xf2] sm:$0xff]
    %v249 = vld [vmem:[#allocation2 + $0x122] sm:$0xff]
    %v250 = vld [vmem:[#allocation2 + $0x132] sm:$0xff]
    %v251 = vld [vmem:[#allocation2 + $0x142] sm:$0xff]
    %v252 = vld [vmem:[#allocation2 + $0x152] sm:$0xff]
    %v253 = vld [vmem:[#allocation2 + $0x162] sm:$0xff]
    %v254 = vld [vmem:[#allocation2 + $0x172] sm:$0xff]
    %v255 = vld [vmem:[#allocation2 + $0x182] sm:$0xff]
    %v256 = vld [vmem:[#allocation2 + $0x192] sm:$0xff]
    %v257 = vld [vmem:[#allocation2 + $0x1a2] sm:$0xff]
    %v258 = vld [vmem:[#allocation2 + $0x1b2] sm:$0xff]
    %v259 = vld [vmem:[#allocation2 + $0x1c2] sm:$0xff]
    %v260 = vld [vmem:[#allocation2 + $0x1d2] sm:$0xff]
    %v261 = vld [vmem:[#allocation2 + $0x1e2] sm:$0xff]
    %v262 = vld [vmem:[#allocation2 + $0x1f2] sm:$0xff]
    %v263 = vld [vmem:[#allocation2 + $0x202] sm:$0xff]
    %v264 = vld [vmem:[#allocation2 + $0x212] sm:$0xff]
    %v265 = vld [vmem:[%s39] sm:$0xff]
    %v266 = vld [vmem:[%s39 + $0x10] sm:$0xff]
    %v267 = vld [vmem:[%s39 + $0x20] sm:$0xff]
    %v268 = vld [vmem:[%s39 + $0x30] sm:$0xff]
    %v269 = vld [vmem:[%s39 + $0x40] sm:$0xff]
    %v270 = vld [vmem:[%s39 + $0x50] sm:$0xff]
    %v271 = vld [vmem:[%s39 + $0x60] sm:$0xff]
    %v272 = vld [vmem:[%s39 + $0x70] sm:$0xff]
    %v273 = vld [vmem:[%s39 + $0x80] sm:$0xff]
    %v274 = vld [vmem:[%s39 + $0x90] sm:$0xff]
    %v275 = vld [vmem:[%s39 + $0xa0] sm:$0xff]
    %v276 = vld [vmem:[%s39 + $0xb0] sm:$0xff]
    %v277 = vld [vmem:[%s39 + $0xc0] sm:$0xff]
    %v278 = vld [vmem:[%s39 + $0xd0] sm:$0xff]
    %v279 = vld [vmem:[%s39 + $0xe0] sm:$0xff]
    %v280 = vld [vmem:[%s39 + $0xf0] sm:$0xff]
    %v281 = vld [vmem:[%s39 + $0x120] sm:$0xff]
    %v282 = vld [vmem:[%s39 + $0x130] sm:$0xff]
    %v283 = vld [vmem:[%s39 + $0x140] sm:$0xff]
    %v284 = vld [vmem:[%s39 + $0x150] sm:$0xff]
    %v285 = vld [vmem:[%s39 + $0x160] sm:$0xff]
    %v286 = vld [vmem:[%s39 + $0x170] sm:$0xff]
    %v287 = vld [vmem:[%s39 + $0x180] sm:$0xff]
    %v288 = vld [vmem:[%s39 + $0x190] sm:$0xff]
    %v289 = vld [vmem:[%s39 + $0x1a0] sm:$0xff]
    %v290 = vld [vmem:[%s39 + $0x1b0] sm:$0xff]
    %v291 = vld [vmem:[%s39 + $0x1c0] sm:$0xff]
    %v292 = vld [vmem:[%s39 + $0x1d0] sm:$0xff]
    %v293 = vld [vmem:[%s39 + $0x1e0] sm:$0xff]
    %v294 = vld [vmem:[%s39 + $0x1f0] sm:$0xff]
    %v295 = vld [vmem:[%s39 + $0x200] sm:$0xff]
    %v296 = vld [vmem:[%s39 + $0x210] sm:$0xff]
    %v297 = vld [vmem:[%s39 + $0x1] sm:$0xff]
    %v298 = vld [vmem:[%s39 + $0x11] sm:$0xff]
    %v299 = vld [vmem:[%s39 + $0x21] sm:$0xff]
    %v300 = vld [vmem:[%s39 + $0x31] sm:$0xff]
    %v301 = vld [vmem:[%s39 + $0x41] sm:$0xff]
    %v302 = vld [vmem:[%s39 + $0x51] sm:$0xff]
    %v303 = vld [vmem:[%s39 + $0x61] sm:$0xff]
    %v304 = vld [vmem:[%s39 + $0x71] sm:$0xff]
    %v305 = vld [vmem:[%s39 + $0x81] sm:$0xff]
    %v306 = vld [vmem:[%s39 + $0x91] sm:$0xff]
    %v307 = vld [vmem:[%s39 + $0xa1] sm:$0xff]
    %v308 = vld [vmem:[%s39 + $0xb1] sm:$0xff]
    %v309 = vld [vmem:[%s39 + $0xc1] sm:$0xff]
    %v310 = vld [vmem:[%s39 + $0xd1] sm:$0xff]
    %v311 = vld [vmem:[%s39 + $0xe1] sm:$0xff]
    %v312 = vld [vmem:[%s39 + $0xf1] sm:$0xff]
    %v313 = vld [vmem:[%s39 + $0x121] sm:$0xff]
    %v314 = vld [vmem:[%s39 + $0x131] sm:$0xff]
    %v315 = vld [vmem:[%s39 + $0x141] sm:$0xff]
    %v316 = vld [vmem:[%s39 + $0x151] sm:$0xff]
    %v317 = vld [vmem:[%s39 + $0x161] sm:$0xff]
    %v318 = vld [vmem:[%s39 + $0x171] sm:$0xff]
    %v319 = vld [vmem:[%s39 + $0x181] sm:$0xff]
    %v320 = vld [vmem:[%s39 + $0x191] sm:$0xff]
    %v321 = vld [vmem:[%s39 + $0x1a1] sm:$0xff]
    %v322 = vld [vmem:[%s39 + $0x1b1] sm:$0xff]
    %v323 = vld [vmem:[%s39 + $0x1c1] sm:$0xff]
    %v324 = vld [vmem:[%s39 + $0x1d1] sm:$0xff]
    %v325 = vld [vmem:[%s39 + $0x1e1] sm:$0xff]
    %v326 = vld [vmem:[%s39 + $0x1f1] sm:$0xff]
    %v327 = vld [vmem:[%s39 + $0x201] sm:$0xff]
    %v328 = vld [vmem:[%s39 + $0x211] sm:$0xff]
    %v329 = vld [vmem:[%s39 + $0x2] sm:$0xff]
    %v330 = vld [vmem:[%s39 + $0x12] sm:$0xff]
    %v331 = vld [vmem:[%s39 + $0x22] sm:$0xff]
    %v332 = vld [vmem:[%s39 + $0x32] sm:$0xff]
    %v333 = vld [vmem:[%s39 + $0x42] sm:$0xff]
    %v334 = vld [vmem:[%s39 + $0x52] sm:$0xff]
    %v335 = vld [vmem:[%s39 + $0x62] sm:$0xff]
    %v336 = vld [vmem:[%s39 + $0x72] sm:$0xff]
    %v337 = vld [vmem:[%s39 + $0x82] sm:$0xff]
    %v338 = vld [vmem:[%s39 + $0x92] sm:$0xff]
    %v339 = vld [vmem:[%s39 + $0xa2] sm:$0xff]
    %v340 = vld [vmem:[%s39 + $0xb2] sm:$0xff]
    %v341 = vld [vmem:[%s39 + $0xc2] sm:$0xff]
    %v342 = vld [vmem:[%s39 + $0xd2] sm:$0xff]
    %v343 = vld [vmem:[%s39 + $0xe2] sm:$0xff]
    %v344 = vld [vmem:[%s39 + $0xf2] sm:$0xff]
    %v345 = vld [vmem:[%s39 + $0x122] sm:$0xff]
    %v346 = vld [vmem:[%s39 + $0x132] sm:$0xff]
    %v347 = vld [vmem:[%s39 + $0x142] sm:$0xff]
    %v348 = vld [vmem:[%s39 + $0x152] sm:$0xff]
    %v349 = vld [vmem:[%s39 + $0x162] sm:$0xff]
    %v350 = vld [vmem:[%s39 + $0x172] sm:$0xff]
    %v351 = vld [vmem:[%s39 + $0x182] sm:$0xff]
    %v352 = vld [vmem:[%s39 + $0x192] sm:$0xff]
    %v353 = vld [vmem:[%s39 + $0x1a2] sm:$0xff]
    %v354 = vld [vmem:[%s39 + $0x1b2] sm:$0xff]
    %v355 = vld [vmem:[%s39 + $0x1c2] sm:$0xff]
    %v356 = vld [vmem:[%s39 + $0x1d2] sm:$0xff]
    %v357 = vld [vmem:[%s39 + $0x1e2] sm:$0xff]
    %v358 = vld [vmem:[%s39 + $0x1f2] sm:$0xff]
    %v359 = vld [vmem:[%s39 + $0x202] sm:$0xff]
    %v360 = vld [vmem:[%s39 + $0x212] sm:$0xff]
    %s361 = scalar_lea.vmem [#allocation2], 32
    %v362 = vld [vmem:[%s361] sm:$0xff]
    %v363 = vld [vmem:[%s361 + $0x10] sm:$0xff]
    %v364 = vld [vmem:[%s361 + $0x20] sm:$0xff]
    %v365 = vld [vmem:[%s361 + $0x30] sm:$0xff]
    %v366 = vld [vmem:[%s361 + $0x40] sm:$0xff]
    %v367 = vld [vmem:[%s361 + $0x50] sm:$0xff]
    %v368 = vld [vmem:[%s361 + $0x60] sm:$0xff]
    %v369 = vld [vmem:[%s361 + $0x70] sm:$0xff]
    %v370 = vld [vmem:[%s361 + $0x80] sm:$0xff]
    %v371 = vld [vmem:[%s361 + $0x90] sm:$0xff]
    %v372 = vld [vmem:[%s361 + $0xa0] sm:$0xff]
    %v373 = vld [vmem:[%s361 + $0xb0] sm:$0xff]
    %v374 = vld [vmem:[%s361 + $0xc0] sm:$0xff]
    %v375 = vld [vmem:[%s361 + $0xd0] sm:$0xff]
    %v376 = vld [vmem:[%s361 + $0xe0] sm:$0xff]
    %v377 = vld [vmem:[%s361 + $0xf0] sm:$0xff]
    %v378 = vld [vmem:[%s361 + $0x120] sm:$0xff]
    %v379 = vld [vmem:[%s361 + $0x130] sm:$0xff]
    %v380 = vld [vmem:[%s361 + $0x140] sm:$0xff]
    %v381 = vld [vmem:[%s361 + $0x150] sm:$0xff]
    %v382 = vld [vmem:[%s361 + $0x160] sm:$0xff]
    %v383 = vld [vmem:[%s361 + $0x170] sm:$0xff]
    %v384 = vld [vmem:[%s361 + $0x180] sm:$0xff]
    %v385 = vld [vmem:[%s361 + $0x190] sm:$0xff]
    %v386 = vld [vmem:[%s361 + $0x1a0] sm:$0xff]
    %v387 = vld [vmem:[%s361 + $0x1b0] sm:$0xff]
    %v388 = vld [vmem:[%s361 + $0x1c0] sm:$0xff]
    %v389 = vld [vmem:[%s361 + $0x1d0] sm:$0xff]
    %v390 = vld [vmem:[%s361 + $0x1e0] sm:$0xff]
    %v391 = vld [vmem:[%s361 + $0x1f0] sm:$0xff]
    %v392 = vld [vmem:[%s361 + $0x200] sm:$0xff]
    %v393 = vld [vmem:[%s361 + $0x210] sm:$0xff]
    %v394 = vld [vmem:[%s361 + $0x1] sm:$0xff]
    %v395 = vld [vmem:[%s361 + $0x11] sm:$0xff]
    %v396 = vld [vmem:[%s361 + $0x21] sm:$0xff]
    %v397 = vld [vmem:[%s361 + $0x31] sm:$0xff]
    %v398 = vld [vmem:[%s361 + $0x41] sm:$0xff]
    %v399 = vld [vmem:[%s361 + $0x51] sm:$0xff]
    %v400 = vld [vmem:[%s361 + $0x61] sm:$0xff]
    %v401 = vld [vmem:[%s361 + $0x71] sm:$0xff]
    %v402 = vld [vmem:[%s361 + $0x81] sm:$0xff]
    %v403 = vld [vmem:[%s361 + $0x91] sm:$0xff]
    %v404 = vld [vmem:[%s361 + $0xa1] sm:$0xff]
    %v405 = vld [vmem:[%s361 + $0xb1] sm:$0xff]
    %v406 = vld [vmem:[%s361 + $0xc1] sm:$0xff]
    %v407 = vld [vmem:[%s361 + $0xd1] sm:$0xff]
    %v408 = vld [vmem:[%s361 + $0xe1] sm:$0xff]
    %v409 = vld [vmem:[%s361 + $0xf1] sm:$0xff]
    %v410 = vld [vmem:[%s361 + $0x121] sm:$0xff]
    %v411 = vld [vmem:[%s361 + $0x131] sm:$0xff]
    %v412 = vld [vmem:[%s361 + $0x141] sm:$0xff]
    %v413 = vld [vmem:[%s361 + $0x151] sm:$0xff]
    %v414 = vld [vmem:[%s361 + $0x161] sm:$0xff]
    %v415 = vld [vmem:[%s361 + $0x171] sm:$0xff]
    %v416 = vld [vmem:[%s361 + $0x181] sm:$0xff]
    %v417 = vld [vmem:[%s361 + $0x191] sm:$0xff]
    %v418 = vld [vmem:[%s361 + $0x1a1] sm:$0xff]
    %v419 = vld [vmem:[%s361 + $0x1b1] sm:$0xff]
    %v420 = vld [vmem:[%s361 + $0x1c1] sm:$0xff]
    %v421 = vld [vmem:[%s361 + $0x1d1] sm:$0xff]
    %v422 = vld [vmem:[%s361 + $0x1e1] sm:$0xff]
    %v423 = vld [vmem:[%s361 + $0x1f1] sm:$0xff]
    %v424 = vld [vmem:[%s361 + $0x201] sm:$0xff]
    %v425 = vld [vmem:[%s361 + $0x211] sm:$0xff]
    %v426 = vld [vmem:[%s361 + $0x2] sm:$0xff]
    %v427 = vld [vmem:[%s361 + $0x12] sm:$0xff]
    %v428 = vld [vmem:[%s361 + $0x22] sm:$0xff]
    %v429 = vld [vmem:[%s361 + $0x32] sm:$0xff]
    %v430 = vld [vmem:[%s361 + $0x42] sm:$0xff]
    %v431 = vld [vmem:[%s361 + $0x52] sm:$0xff]
    %v432 = vld [vmem:[%s361 + $0x62] sm:$0xff]
    %v433 = vld [vmem:[%s361 + $0x72] sm:$0xff]
    %v434 = vld [vmem:[%s361 + $0x82] sm:$0xff]
    %v435 = vld [vmem:[%s361 + $0x92] sm:$0xff]
    %v436 = vld [vmem:[%s361 + $0xa2] sm:$0xff]
    %v437 = vld [vmem:[%s361 + $0xb2] sm:$0xff]
    %v438 = vld [vmem:[%s361 + $0xc2] sm:$0xff]
    %v439 = vld [vmem:[%s361 + $0xd2] sm:$0xff]
    %v440 = vld [vmem:[%s361 + $0xe2] sm:$0xff]
    %v441 = vld [vmem:[%s361 + $0xf2] sm:$0xff]
    %v442 = vld [vmem:[%s361 + $0x122] sm:$0xff]
    %v443 = vld [vmem:[%s361 + $0x132] sm:$0xff]
    %v444 = vld [vmem:[%s361 + $0x142] sm:$0xff]
    %v445 = vld [vmem:[%s361 + $0x152] sm:$0xff]
    %v446 = vld [vmem:[%s361 + $0x162] sm:$0xff]
    %v447 = vld [vmem:[%s361 + $0x172] sm:$0xff]
    %v448 = vld [vmem:[%s361 + $0x182] sm:$0xff]
    %v449 = vld [vmem:[%s361 + $0x192] sm:$0xff]
    %v450 = vld [vmem:[%s361 + $0x1a2] sm:$0xff]
    %v451 = vld [vmem:[%s361 + $0x1b2] sm:$0xff]
    %v452 = vld [vmem:[%s361 + $0x1c2] sm:$0xff]
    %v453 = vld [vmem:[%s361 + $0x1d2] sm:$0xff]
    %v454 = vld [vmem:[%s361 + $0x1e2] sm:$0xff]
    %v455 = vld [vmem:[%s361 + $0x1f2] sm:$0xff]
    %v456 = vld [vmem:[%s361 + $0x202] sm:$0xff]
    %v457 = vld [vmem:[%s361 + $0x212] sm:$0xff]
    %490 = vrot.lane.b32.xlu0 %v201, 1
    %v491 = vpop.permute.xlu0 %490
    %492 = vrot.lane.b32.xlu0 %v202, 1
    %v493 = vpop.permute.xlu0 %492
    %494 = vrot.lane.b32.xlu0 %v203, 1
    %v495 = vpop.permute.xlu0 %494
    %496 = vrot.lane.b32.xlu0 %v204, 1
    %v497 = vpop.permute.xlu0 %496
    %498 = vrot.lane.b32.xlu0 %v205, 1
    %v499 = vpop.permute.xlu0 %498
    %500 = vrot.lane.b32.xlu0 %v206, 1
    %v501 = vpop.permute.xlu0 %500
    %502 = vrot.lane.b32.xlu0 %v207, 1
    %v503 = vpop.permute.xlu0 %502
    %504 = vrot.lane.b32.xlu0 %v208, 1
    %v505 = vpop.permute.xlu0 %504
    %506 = vrot.lane.b32.xlu0 %v209, 1
    %v507 = vpop.permute.xlu0 %506
    %508 = vrot.lane.b32.xlu0 %v210, 1
    %v509 = vpop.permute.xlu0 %508
    %510 = vrot.lane.b32.xlu0 %v211, 1
    %v511 = vpop.permute.xlu0 %510
    %512 = vrot.lane.b32.xlu0 %v212, 1
    %v513 = vpop.permute.xlu0 %512
    %514 = vrot.lane.b32.xlu0 %v213, 1
    %v515 = vpop.permute.xlu0 %514
    %516 = vrot.lane.b32.xlu0 %v214, 1
    %v517 = vpop.permute.xlu0 %516
    %518 = vrot.lane.b32.xlu0 %v215, 1
    %v519 = vpop.permute.xlu0 %518
    %520 = vrot.lane.b32.xlu0 %v216, 1
    %v521 = vpop.permute.xlu0 %520
    %522 = vrot.lane.b32.xlu0 %v217, 1
    %v523 = vpop.permute.xlu0 %522
    %524 = vrot.lane.b32.xlu0 %v218, 1
    %v525 = vpop.permute.xlu0 %524
    %526 = vrot.lane.b32.xlu0 %v219, 1
    %v527 = vpop.permute.xlu0 %526
    %528 = vrot.lane.b32.xlu0 %v220, 1
    %v529 = vpop.permute.xlu0 %528
    %530 = vrot.lane.b32.xlu0 %v221, 1
    %v531 = vpop.permute.xlu0 %530
    %532 = vrot.lane.b32.xlu0 %v222, 1
    %v533 = vpop.permute.xlu0 %532
    %534 = vrot.lane.b32.xlu0 %v223, 1
    %v535 = vpop.permute.xlu0 %534
    %536 = vrot.lane.b32.xlu0 %v224, 1
    %v537 = vpop.permute.xlu0 %536
    %538 = vrot.lane.b32.xlu0 %v225, 1
    %v539 = vpop.permute.xlu0 %538
    %540 = vrot.lane.b32.xlu0 %v226, 1
    %v541 = vpop.permute.xlu0 %540
    %542 = vrot.lane.b32.xlu0 %v227, 1
    %v543 = vpop.permute.xlu0 %542
    %544 = vrot.lane.b32.xlu0 %v228, 1
    %v545 = vpop.permute.xlu0 %544
    %546 = vrot.lane.b32.xlu0 %v229, 1
    %v547 = vpop.permute.xlu0 %546
    %548 = vrot.lane.b32.xlu0 %v230, 1
    %v549 = vpop.permute.xlu0 %548
    %550 = vrot.lane.b32.xlu0 %v231, 1
    %v551 = vpop.permute.xlu0 %550
    %552 = vrot.lane.b32.xlu0 %v232, 1
    %v553 = vpop.permute.xlu0 %552
    %618 = vrot.lane.b32.xlu0 %v233, 2
    %v619 = vpop.permute.xlu0 %618
    %620 = vrot.lane.b32.xlu0 %v234, 2
    %v621 = vpop.permute.xlu0 %620
    %622 = vrot.lane.b32.xlu0 %v235, 2
    %v623 = vpop.permute.xlu0 %622
    %624 = vrot.lane.b32.xlu0 %v236, 2
    %v625 = vpop.permute.xlu0 %624
    %626 = vrot.lane.b32.xlu0 %v237, 2
    %v627 = vpop.permute.xlu0 %626
    %628 = vrot.lane.b32.xlu0 %v238, 2
    %v629 = vpop.permute.xlu0 %628
    %630 = vrot.lane.b32.xlu0 %v239, 2
    %v631 = vpop.permute.xlu0 %630
    %632 = vrot.lane.b32.xlu0 %v240, 2
    %v633 = vpop.permute.xlu0 %632
    %634 = vrot.lane.b32.xlu0 %v241, 2
    %v635 = vpop.permute.xlu0 %634
    %636 = vrot.lane.b32.xlu0 %v242, 2
    %v637 = vpop.permute.xlu0 %636
    %638 = vrot.lane.b32.xlu0 %v243, 2
    %v639 = vpop.permute.xlu0 %638
    %640 = vrot.lane.b32.xlu0 %v244, 2
    %v641 = vpop.permute.xlu0 %640
    %642 = vrot.lane.b32.xlu0 %v245, 2
    %v643 = vpop.permute.xlu0 %642
    %644 = vrot.lane.b32.xlu0 %v246, 2
    %v645 = vpop.permute.xlu0 %644
    %646 = vrot.lane.b32.xlu0 %v247, 2
    %v647 = vpop.permute.xlu0 %646
    %648 = vrot.lane.b32.xlu0 %v248, 2
    %v649 = vpop.permute.xlu0 %648
    %650 = vrot.lane.b32.xlu0 %v249, 2
    %v651 = vpop.permute.xlu0 %650
    %652 = vrot.lane.b32.xlu0 %v250, 2
    %v653 = vpop.permute.xlu0 %652
    %654 = vrot.lane.b32.xlu0 %v251, 2
    %v655 = vpop.permute.xlu0 %654
    %656 = vrot.lane.b32.xlu0 %v252, 2
    %v657 = vpop.permute.xlu0 %656
    %658 = vrot.lane.b32.xlu0 %v253, 2
    %v659 = vpop.permute.xlu0 %658
    %660 = vrot.lane.b32.xlu0 %v254, 2
    %v661 = vpop.permute.xlu0 %660
    %662 = vrot.lane.b32.xlu0 %v255, 2
    %v663 = vpop.permute.xlu0 %662
    %664 = vrot.lane.b32.xlu0 %v256, 2
    %v665 = vpop.permute.xlu0 %664
    %666 = vrot.lane.b32.xlu0 %v257, 2
    %v667 = vpop.permute.xlu0 %666
    %668 = vrot.lane.b32.xlu0 %v258, 2
    %v669 = vpop.permute.xlu0 %668
    %670 = vrot.lane.b32.xlu0 %v259, 2
    %v671 = vpop.permute.xlu0 %670
    %672 = vrot.lane.b32.xlu0 %v260, 2
    %v673 = vpop.permute.xlu0 %672
    %674 = vrot.lane.b32.xlu0 %v261, 2
    %v675 = vpop.permute.xlu0 %674
    %676 = vrot.lane.b32.xlu0 %v262, 2
    %v677 = vpop.permute.xlu0 %676
    %678 = vrot.lane.b32.xlu0 %v263, 2
    %v679 = vpop.permute.xlu0 %678
    %680 = vrot.lane.b32.xlu0 %v264, 2
    %v681 = vpop.permute.xlu0 %680
    %746 = vrot.lane.b32.xlu0 %v265, 3
    %v747 = vpop.permute.xlu0 %746
    %748 = vrot.lane.b32.xlu0 %v266, 3
    %v749 = vpop.permute.xlu0 %748
    %750 = vrot.lane.b32.xlu0 %v267, 3
    %v751 = vpop.permute.xlu0 %750
    %752 = vrot.lane.b32.xlu0 %v268, 3
    %v753 = vpop.permute.xlu0 %752
    %754 = vrot.lane.b32.xlu0 %v269, 3
    %v755 = vpop.permute.xlu0 %754
    %756 = vrot.lane.b32.xlu0 %v270, 3
    %v757 = vpop.permute.xlu0 %756
    %758 = vrot.lane.b32.xlu0 %v271, 3
    %v759 = vpop.permute.xlu0 %758
    %760 = vrot.lane.b32.xlu0 %v272, 3
    %v761 = vpop.permute.xlu0 %760
    %762 = vrot.lane.b32.xlu0 %v273, 3
    %v763 = vpop.permute.xlu0 %762
    %764 = vrot.lane.b32.xlu0 %v274, 3
    %v765 = vpop.permute.xlu0 %764
    %766 = vrot.lane.b32.xlu0 %v275, 3
    %v767 = vpop.permute.xlu0 %766
    %768 = vrot.lane.b32.xlu0 %v276, 3
    %v769 = vpop.permute.xlu0 %768
    %770 = vrot.lane.b32.xlu0 %v277, 3
    %v771 = vpop.permute.xlu0 %770
    %772 = vrot.lane.b32.xlu0 %v278, 3
    %v773 = vpop.permute.xlu0 %772
    %774 = vrot.lane.b32.xlu0 %v279, 3
    %v775 = vpop.permute.xlu0 %774
    %776 = vrot.lane.b32.xlu0 %v280, 3
    %v777 = vpop.permute.xlu0 %776
    %778 = vrot.lane.b32.xlu0 %v281, 3
    %v779 = vpop.permute.xlu0 %778
    %780 = vrot.lane.b32.xlu0 %v282, 3
    %v781 = vpop.permute.xlu0 %780
    %782 = vrot.lane.b32.xlu0 %v283, 3
    %v783 = vpop.permute.xlu0 %782
    %784 = vrot.lane.b32.xlu0 %v284, 3
    %v785 = vpop.permute.xlu0 %784
    %786 = vrot.lane.b32.xlu0 %v285, 3
    %v787 = vpop.permute.xlu0 %786
    %788 = vrot.lane.b32.xlu0 %v286, 3
    %v789 = vpop.permute.xlu0 %788
    %790 = vrot.lane.b32.xlu0 %v287, 3
    %v791 = vpop.permute.xlu0 %790
    %792 = vrot.lane.b32.xlu0 %v288, 3
    %v793 = vpop.permute.xlu0 %792
    %794 = vrot.lane.b32.xlu0 %v289, 3
    %v795 = vpop.permute.xlu0 %794
    %796 = vrot.lane.b32.xlu0 %v290, 3
    %v797 = vpop.permute.xlu0 %796
    %798 = vrot.lane.b32.xlu0 %v291, 3
    %v799 = vpop.permute.xlu0 %798
    %800 = vrot.lane.b32.xlu0 %v292, 3
    %v801 = vpop.permute.xlu0 %800
    %802 = vrot.lane.b32.xlu0 %v293, 3
    %v803 = vpop.permute.xlu0 %802
    %804 = vrot.lane.b32.xlu0 %v294, 3
    %v805 = vpop.permute.xlu0 %804
    %806 = vrot.lane.b32.xlu0 %v295, 3
    %v807 = vpop.permute.xlu0 %806
    %808 = vrot.lane.b32.xlu0 %v296, 3
    %v809 = vpop.permute.xlu0 %808
    %874 = vrot.lane.b32.xlu0 %v297, 4
    %v875 = vpop.permute.xlu0 %874
    %876 = vrot.lane.b32.xlu0 %v298, 4
    %v877 = vpop.permute.xlu0 %876
    %878 = vrot.lane.b32.xlu0 %v299, 4
    %v879 = vpop.permute.xlu0 %878
    %880 = vrot.lane.b32.xlu0 %v300, 4
    %v881 = vpop.permute.xlu0 %880
    %882 = vrot.lane.b32.xlu0 %v301, 4
    %v883 = vpop.permute.xlu0 %882
    %884 = vrot.lane.b32.xlu0 %v302, 4
    %v885 = vpop.permute.xlu0 %884
    %886 = vrot.lane.b32.xlu0 %v303, 4
    %v887 = vpop.permute.xlu0 %886
    %888 = vrot.lane.b32.xlu0 %v304, 4
    %v889 = vpop.permute.xlu0 %888
    %890 = vrot.lane.b32.xlu0 %v305, 4
    %v891 = vpop.permute.xlu0 %890
    %892 = vrot.lane.b32.xlu0 %v306, 4
    %v893 = vpop.permute.xlu0 %892
    %894 = vrot.lane.b32.xlu0 %v307, 4
    %v895 = vpop.permute.xlu0 %894
    %896 = vrot.lane.b32.xlu0 %v308, 4
    %v897 = vpop.permute.xlu0 %896
    %898 = vrot.lane.b32.xlu0 %v309, 4
    %v899 = vpop.permute.xlu0 %898
    %900 = vrot.lane.b32.xlu0 %v310, 4
    %v901 = vpop.permute.xlu0 %900
    %902 = vrot.lane.b32.xlu0 %v311, 4
    %v903 = vpop.permute.xlu0 %902
    %904 = vrot.lane.b32.xlu0 %v312, 4
    %v905 = vpop.permute.xlu0 %904
    %906 = vrot.lane.b32.xlu0 %v313, 4
    %v907 = vpop.permute.xlu0 %906
    %908 = vrot.lane.b32.xlu0 %v314, 4
    %v909 = vpop.permute.xlu0 %908
    %910 = vrot.lane.b32.xlu0 %v315, 4
    %v911 = vpop.permute.xlu0 %910
    %912 = vrot.lane.b32.xlu0 %v316, 4
    %v913 = vpop.permute.xlu0 %912
    %914 = vrot.lane.b32.xlu0 %v317, 4
    %v915 = vpop.permute.xlu0 %914
    %916 = vrot.lane.b32.xlu0 %v318, 4
    %v917 = vpop.permute.xlu0 %916
    %918 = vrot.lane.b32.xlu0 %v319, 4
    %v919 = vpop.permute.xlu0 %918
    %920 = vrot.lane.b32.xlu0 %v320, 4
    %v921 = vpop.permute.xlu0 %920
    %922 = vrot.lane.b32.xlu0 %v321, 4
    %v923 = vpop.permute.xlu0 %922
    %924 = vrot.lane.b32.xlu0 %v322, 4
    %v925 = vpop.permute.xlu0 %924
    %926 = vrot.lane.b32.xlu0 %v323, 4
    %v927 = vpop.permute.xlu0 %926
    %928 = vrot.lane.b32.xlu0 %v324, 4
    %v929 = vpop.permute.xlu0 %928
    %930 = vrot.lane.b32.xlu0 %v325, 4
    %v931 = vpop.permute.xlu0 %930
    %932 = vrot.lane.b32.xlu0 %v326, 4
    %v933 = vpop.permute.xlu0 %932
    %934 = vrot.lane.b32.xlu0 %v327, 4
    %v935 = vpop.permute.xlu0 %934
    %936 = vrot.lane.b32.xlu0 %v328, 4
    %v937 = vpop.permute.xlu0 %936
    %1002 = vrot.lane.b32.xlu0 %v329, 5
    %v1003 = vpop.permute.xlu0 %1002
    %1004 = vrot.lane.b32.xlu0 %v330, 5
    %v1005 = vpop.permute.xlu0 %1004
    %1006 = vrot.lane.b32.xlu0 %v331, 5
    %v1007 = vpop.permute.xlu0 %1006
    %1008 = vrot.lane.b32.xlu0 %v332, 5
    %v1009 = vpop.permute.xlu0 %1008
    %1010 = vrot.lane.b32.xlu0 %v333, 5
    %v1011 = vpop.permute.xlu0 %1010
    %1012 = vrot.lane.b32.xlu0 %v334, 5
    %v1013 = vpop.permute.xlu0 %1012
    %1014 = vrot.lane.b32.xlu0 %v335, 5
    %v1015 = vpop.permute.xlu0 %1014
    %1016 = vrot.lane.b32.xlu0 %v336, 5
    %v1017 = vpop.permute.xlu0 %1016
    %1018 = vrot.lane.b32.xlu0 %v337, 5
    %v1019 = vpop.permute.xlu0 %1018
    %1020 = vrot.lane.b32.xlu0 %v338, 5
    %v1021 = vpop.permute.xlu0 %1020
    %1022 = vrot.lane.b32.xlu0 %v339, 5
    %v1023 = vpop.permute.xlu0 %1022
    %1024 = vrot.lane.b32.xlu0 %v340, 5
    %v1025 = vpop.permute.xlu0 %1024
    %1026 = vrot.lane.b32.xlu0 %v341, 5
    %v1027 = vpop.permute.xlu0 %1026
    %1028 = vrot.lane.b32.xlu0 %v342, 5
    %v1029 = vpop.permute.xlu0 %1028
    %1030 = vrot.lane.b32.xlu0 %v343, 5
    %v1031 = vpop.permute.xlu0 %1030
    %1032 = vrot.lane.b32.xlu0 %v344, 5
    %v1033 = vpop.permute.xlu0 %1032
    %1034 = vrot.lane.b32.xlu0 %v345, 5
    %v1035 = vpop.permute.xlu0 %1034
    %1036 = vrot.lane.b32.xlu0 %v346, 5
    %v1037 = vpop.permute.xlu0 %1036
    %1038 = vrot.lane.b32.xlu0 %v347, 5
    %v1039 = vpop.permute.xlu0 %1038
    %1040 = vrot.lane.b32.xlu0 %v348, 5
    %v1041 = vpop.permute.xlu0 %1040
    %1042 = vrot.lane.b32.xlu0 %v349, 5
    %v1043 = vpop.permute.xlu0 %1042
    %1044 = vrot.lane.b32.xlu0 %v350, 5
    %v1045 = vpop.permute.xlu0 %1044
    %1046 = vrot.lane.b32.xlu0 %v351, 5
    %v1047 = vpop.permute.xlu0 %1046
    %1048 = vrot.lane.b32.xlu0 %v352, 5
    %v1049 = vpop.permute.xlu0 %1048
    %1050 = vrot.lane.b32.xlu0 %v353, 5
    %v1051 = vpop.permute.xlu0 %1050
    %1052 = vrot.lane.b32.xlu0 %v354, 5
    %v1053 = vpop.permute.xlu0 %1052
    %1054 = vrot.lane.b32.xlu0 %v355, 5
    %v1055 = vpop.permute.xlu0 %1054
    %1056 = vrot.lane.b32.xlu0 %v356, 5
    %v1057 = vpop.permute.xlu0 %1056
    %1058 = vrot.lane.b32.xlu0 %v357, 5
    %v1059 = vpop.permute.xlu0 %1058
    %1060 = vrot.lane.b32.xlu0 %v358, 5
    %v1061 = vpop.permute.xlu0 %1060
    %1062 = vrot.lane.b32.xlu0 %v359, 5
    %v1063 = vpop.permute.xlu0 %1062
    %1064 = vrot.lane.b32.xlu0 %v360, 5
    %v1065 = vpop.permute.xlu0 %1064
    %1130 = vrot.lane.b32.xlu0 %v362, 6
    %v1131 = vpop.permute.xlu0 %1130
    %1132 = vrot.lane.b32.xlu0 %v363, 6
    %v1133 = vpop.permute.xlu0 %1132
    %1134 = vrot.lane.b32.xlu0 %v364, 6
    %v1135 = vpop.permute.xlu0 %1134
    %1136 = vrot.lane.b32.xlu0 %v365, 6
    %v1137 = vpop.permute.xlu0 %1136
    %1138 = vrot.lane.b32.xlu0 %v366, 6
    %v1139 = vpop.permute.xlu0 %1138
    %1140 = vrot.lane.b32.xlu0 %v367, 6
    %v1141 = vpop.permute.xlu0 %1140
    %1142 = vrot.lane.b32.xlu0 %v368, 6
    %v1143 = vpop.permute.xlu0 %1142
    %1144 = vrot.lane.b32.xlu0 %v369, 6
    %v1145 = vpop.permute.xlu0 %1144
    %1146 = vrot.lane.b32.xlu0 %v370, 6
    %v1147 = vpop.permute.xlu0 %1146
    %1148 = vrot.lane.b32.xlu0 %v371, 6
    %v1149 = vpop.permute.xlu0 %1148
    %1150 = vrot.lane.b32.xlu0 %v372, 6
    %v1151 = vpop.permute.xlu0 %1150
    %1152 = vrot.lane.b32.xlu0 %v373, 6
    %v1153 = vpop.permute.xlu0 %1152
    %1154 = vrot.lane.b32.xlu0 %v374, 6
    %v1155 = vpop.permute.xlu0 %1154
    %1156 = vrot.lane.b32.xlu0 %v375, 6
    %v1157 = vpop.permute.xlu0 %1156
    %1158 = vrot.lane.b32.xlu0 %v376, 6
    %v1159 = vpop.permute.xlu0 %1158
    %1160 = vrot.lane.b32.xlu0 %v377, 6
    %v1161 = vpop.permute.xlu0 %1160
    %1162 = vrot.lane.b32.xlu0 %v378, 6
    %v1163 = vpop.permute.xlu0 %1162
    %1164 = vrot.lane.b32.xlu0 %v379, 6
    %v1165 = vpop.permute.xlu0 %1164
    %1166 = vrot.lane.b32.xlu0 %v380, 6
    %v1167 = vpop.permute.xlu0 %1166
    %1168 = vrot.lane.b32.xlu0 %v381, 6
    %v1169 = vpop.permute.xlu0 %1168
    %1170 = vrot.lane.b32.xlu0 %v382, 6
    %v1171 = vpop.permute.xlu0 %1170
    %1172 = vrot.lane.b32.xlu0 %v383, 6
    %v1173 = vpop.permute.xlu0 %1172
    %1174 = vrot.lane.b32.xlu0 %v384, 6
    %v1175 = vpop.permute.xlu0 %1174
    %1176 = vrot.lane.b32.xlu0 %v385, 6
    %v1177 = vpop.permute.xlu0 %1176
    %1178 = vrot.lane.b32.xlu0 %v386, 6
    %v1179 = vpop.permute.xlu0 %1178
    %1180 = vrot.lane.b32.xlu0 %v387, 6
    %v1181 = vpop.permute.xlu0 %1180
    %1182 = vrot.lane.b32.xlu0 %v388, 6
    %v1183 = vpop.permute.xlu0 %1182
    %1184 = vrot.lane.b32.xlu0 %v389, 6
    %v1185 = vpop.permute.xlu0 %1184
    %1186 = vrot.lane.b32.xlu0 %v390, 6
    %v1187 = vpop.permute.xlu0 %1186
    %1188 = vrot.lane.b32.xlu0 %v391, 6
    %v1189 = vpop.permute.xlu0 %1188
    %1190 = vrot.lane.b32.xlu0 %v392, 6
    %v1191 = vpop.permute.xlu0 %1190
    %1192 = vrot.lane.b32.xlu0 %v393, 6
    %v1193 = vpop.permute.xlu0 %1192
    %1258 = vrot.lane.b32.xlu0 %v394, 7
    %v1259 = vpop.permute.xlu0 %1258
    %1260 = vrot.lane.b32.xlu0 %v395, 7
    %v1261 = vpop.permute.xlu0 %1260
    %1262 = vrot.lane.b32.xlu0 %v396, 7
    %v1263 = vpop.permute.xlu0 %1262
    %1264 = vrot.lane.b32.xlu0 %v397, 7
    %v1265 = vpop.permute.xlu0 %1264
    %1266 = vrot.lane.b32.xlu0 %v398, 7
    %v1267 = vpop.permute.xlu0 %1266
    %1268 = vrot.lane.b32.xlu0 %v399, 7
    %v1269 = vpop.permute.xlu0 %1268
    %1270 = vrot.lane.b32.xlu0 %v400, 7
    %v1271 = vpop.permute.xlu0 %1270
    %1272 = vrot.lane.b32.xlu0 %v401, 7
    %v1273 = vpop.permute.xlu0 %1272
    %1274 = vrot.lane.b32.xlu0 %v402, 7
    %v1275 = vpop.permute.xlu0 %1274
    %1276 = vrot.lane.b32.xlu0 %v403, 7
    %v1277 = vpop.permute.xlu0 %1276
    %1278 = vrot.lane.b32.xlu0 %v404, 7
    %v1279 = vpop.permute.xlu0 %1278
    %1280 = vrot.lane.b32.xlu0 %v405, 7
    %v1281 = vpop.permute.xlu0 %1280
    %1282 = vrot.lane.b32.xlu0 %v406, 7
    %v1283 = vpop.permute.xlu0 %1282
    %1284 = vrot.lane.b32.xlu0 %v407, 7
    %v1285 = vpop.permute.xlu0 %1284
    %1286 = vrot.lane.b32.xlu0 %v408, 7
    %v1287 = vpop.permute.xlu0 %1286
    %1288 = vrot.lane.b32.xlu0 %v409, 7
    %v1289 = vpop.permute.xlu0 %1288
    %1290 = vrot.lane.b32.xlu0 %v410, 7
    %v1291 = vpop.permute.xlu0 %1290
    %1292 = vrot.lane.b32.xlu0 %v411, 7
    %v1293 = vpop.permute.xlu0 %1292
    %1294 = vrot.lane.b32.xlu0 %v412, 7
    %v1295 = vpop.permute.xlu0 %1294
    %1296 = vrot.lane.b32.xlu0 %v413, 7
    %v1297 = vpop.permute.xlu0 %1296
    %1298 = vrot.lane.b32.xlu0 %v414, 7
    %v1299 = vpop.permute.xlu0 %1298
    %1300 = vrot.lane.b32.xlu0 %v415, 7
    %v1301 = vpop.permute.xlu0 %1300
    %1302 = vrot.lane.b32.xlu0 %v416, 7
    %v1303 = vpop.permute.xlu0 %1302
    %1304 = vrot.lane.b32.xlu0 %v417, 7
    %v1305 = vpop.permute.xlu0 %1304
    %1306 = vrot.lane.b32.xlu0 %v418, 7
    %v1307 = vpop.permute.xlu0 %1306
    %1308 = vrot.lane.b32.xlu0 %v419, 7
    %v1309 = vpop.permute.xlu0 %1308
    %1310 = vrot.lane.b32.xlu0 %v420, 7
    %v1311 = vpop.permute.xlu0 %1310
    %1312 = vrot.lane.b32.xlu0 %v421, 7
    %v1313 = vpop.permute.xlu0 %1312
    %1314 = vrot.lane.b32.xlu0 %v422, 7
    %v1315 = vpop.permute.xlu0 %1314
    %1316 = vrot.lane.b32.xlu0 %v423, 7
    %v1317 = vpop.permute.xlu0 %1316
    %1318 = vrot.lane.b32.xlu0 %v424, 7
    %v1319 = vpop.permute.xlu0 %1318
    %1320 = vrot.lane.b32.xlu0 %v425, 7
    %v1321 = vpop.permute.xlu0 %1320
    %1386 = vrot.lane.b32.xlu0 %v426, 8
    %v1387 = vpop.permute.xlu0 %1386
    %1388 = vrot.lane.b32.xlu0 %v427, 8
    %v1389 = vpop.permute.xlu0 %1388
    %1390 = vrot.lane.b32.xlu0 %v428, 8
    %v1391 = vpop.permute.xlu0 %1390
    %1392 = vrot.lane.b32.xlu0 %v429, 8
    %v1393 = vpop.permute.xlu0 %1392
    %1394 = vrot.lane.b32.xlu0 %v430, 8
    %v1395 = vpop.permute.xlu0 %1394
    %1396 = vrot.lane.b32.xlu0 %v431, 8
    %v1397 = vpop.permute.xlu0 %1396
    %1398 = vrot.lane.b32.xlu0 %v432, 8
    %v1399 = vpop.permute.xlu0 %1398
    %1400 = vrot.lane.b32.xlu0 %v433, 8
    %v1401 = vpop.permute.xlu0 %1400
    %1402 = vrot.lane.b32.xlu0 %v434, 8
    %v1403 = vpop.permute.xlu0 %1402
    %1404 = vrot.lane.b32.xlu0 %v435, 8
    %v1405 = vpop.permute.xlu0 %1404
    %1406 = vrot.lane.b32.xlu0 %v436, 8
    %v1407 = vpop.permute.xlu0 %1406
    %1408 = vrot.lane.b32.xlu0 %v437, 8
    %v1409 = vpop.permute.xlu0 %1408
    %1410 = vrot.lane.b32.xlu0 %v438, 8
    %v1411 = vpop.permute.xlu0 %1410
    %1412 = vrot.lane.b32.xlu0 %v439, 8
    %v1413 = vpop.permute.xlu0 %1412
    %1414 = vrot.lane.b32.xlu0 %v440, 8
    %v1415 = vpop.permute.xlu0 %1414
    %1416 = vrot.lane.b32.xlu0 %v441, 8
    %v1417 = vpop.permute.xlu0 %1416
    %1418 = vrot.lane.b32.xlu0 %v442, 8
    %v1419 = vpop.permute.xlu0 %1418
    %1420 = vrot.lane.b32.xlu0 %v443, 8
    %v1421 = vpop.permute.xlu0 %1420
    %1422 = vrot.lane.b32.xlu0 %v444, 8
    %v1423 = vpop.permute.xlu0 %1422
    %1424 = vrot.lane.b32.xlu0 %v445, 8
    %v1425 = vpop.permute.xlu0 %1424
    %1426 = vrot.lane.b32.xlu0 %v446, 8
    %v1427 = vpop.permute.xlu0 %1426
    %1428 = vrot.lane.b32.xlu0 %v447, 8
    %v1429 = vpop.permute.xlu0 %1428
    %1430 = vrot.lane.b32.xlu0 %v448, 8
    %v1431 = vpop.permute.xlu0 %1430
    %1432 = vrot.lane.b32.xlu0 %v449, 8
    %v1433 = vpop.permute.xlu0 %1432
    %1434 = vrot.lane.b32.xlu0 %v450, 8
    %v1435 = vpop.permute.xlu0 %1434
    %1436 = vrot.lane.b32.xlu0 %v451, 8
    %v1437 = vpop.permute.xlu0 %1436
    %1438 = vrot.lane.b32.xlu0 %v452, 8
    %v1439 = vpop.permute.xlu0 %1438
    %1440 = vrot.lane.b32.xlu0 %v453, 8
    %v1441 = vpop.permute.xlu0 %1440
    %1442 = vrot.lane.b32.xlu0 %v454, 8
    %v1443 = vpop.permute.xlu0 %1442
    %1444 = vrot.lane.b32.xlu0 %v455, 8
    %v1445 = vpop.permute.xlu0 %1444
    %1446 = vrot.lane.b32.xlu0 %v456, 8
    %v1447 = vpop.permute.xlu0 %1446
    %1448 = vrot.lane.b32.xlu0 %v457, 8
    %v1449 = vpop.permute.xlu0 %1448
    %v1482 = vsel %vm28, %v169, %v491
    %v1483 = vsel %vm28, %v170, %v493
    %v1484 = vsel %vm28, %v171, %v495
    %v1485 = vsel %vm28, %v172, %v497
    %v1486 = vsel %vm28, %v173, %v499
    %v1487 = vsel %vm28, %v174, %v501
    %v1488 = vsel %vm28, %v175, %v503
    %v1489 = vsel %vm28, %v176, %v505
    %v1490 = vsel %vm28, %v177, %v507
    %v1491 = vsel %vm28, %v178, %v509
    %v1492 = vsel %vm28, %v179, %v511
    %v1493 = vsel %vm28, %v180, %v513
    %v1494 = vsel %vm28, %v181, %v515
    %v1495 = vsel %vm28, %v182, %v517
    %v1496 = vsel %vm28, %v183, %v519
    %v1497 = vsel %vm28, %v184, %v521
    %v1498 = vsel %vm28, %v185, %v523
    %v1499 = vsel %vm28, %v186, %v525
    %v1500 = vsel %vm28, %v187, %v527
    %v1501 = vsel %vm28, %v188, %v529
    %v1502 = vsel %vm28, %v189, %v531
    %v1503 = vsel %vm28, %v190, %v533
    %v1504 = vsel %vm28, %v191, %v535
    %v1505 = vsel %vm28, %v192, %v537
    %v1506 = vsel %vm28, %v193, %v539
    %v1507 = vsel %vm28, %v194, %v541
    %v1508 = vsel %vm28, %v195, %v543
    %v1509 = vsel %vm28, %v196, %v545
    %v1510 = vsel %vm28, %v197, %v547
    %v1511 = vsel %vm28, %v198, %v549
    %v1512 = vsel %vm28, %v199, %v551
    %v1513 = vsel %vm28, %v200, %v553
    %vm1514 = vcmask 15360
    %v1515 = vsel %vm1514, %v1482, %v619
    %v1516 = vsel %vm1514, %v1483, %v621
    %v1517 = vsel %vm1514, %v1484, %v623
    %v1518 = vsel %vm1514, %v1485, %v625
    %v1519 = vsel %vm1514, %v1486, %v627
    %v1520 = vsel %vm1514, %v1487, %v629
    %v1521 = vsel %vm1514, %v1488, %v631
    %v1522 = vsel %vm1514, %v1489, %v633
    %v1523 = vsel %vm1514, %v1490, %v635
    %v1524 = vsel %vm1514, %v1491, %v637
    %v1525 = vsel %vm1514, %v1492, %v639
    %v1526 = vsel %vm1514, %v1493, %v641
    %v1527 = vsel %vm1514, %v1494, %v643
    %v1528 = vsel %vm1514, %v1495, %v645
    %v1529 = vsel %vm1514, %v1496, %v647
    %v1530 = vsel %vm1514, %v1497, %v649
    %v1531 = vsel %vm1514, %v1498, %v651
    %v1532 = vsel %vm1514, %v1499, %v653
    %v1533 = vsel %vm1514, %v1500, %v655
    %v1534 = vsel %vm1514, %v1501, %v657
    %v1535 = vsel %vm1514, %v1502, %v659
    %v1536 = vsel %vm1514, %v1503, %v661
    %v1537 = vsel %vm1514, %v1504, %v663
    %v1538 = vsel %vm1514, %v1505, %v665
    %v1539 = vsel %vm1514, %v1506, %v667
    %v1540 = vsel %vm1514, %v1507, %v669
    %v1541 = vsel %vm1514, %v1508, %v671
    %v1542 = vsel %vm1514, %v1509, %v673
    %v1543 = vsel %vm1514, %v1510, %v675
    %v1544 = vsel %vm1514, %v1511, %v677
    %v1545 = vsel %vm1514, %v1512, %v679
    %v1546 = vsel %vm1514, %v1513, %v681
    %vm1547 = vcmask 23552
    %v1548 = vsel %vm1547, %v1515, %v747
    %v1549 = vsel %vm1547, %v1516, %v749
    %v1550 = vsel %vm1547, %v1517, %v751
    %v1551 = vsel %vm1547, %v1518, %v753
    %v1552 = vsel %vm1547, %v1519, %v755
    %v1553 = vsel %vm1547, %v1520, %v757
    %v1554 = vsel %vm1547, %v1521, %v759
    %v1555 = vsel %vm1547, %v1522, %v761
    %v1556 = vsel %vm1547, %v1523, %v763
    %v1557 = vsel %vm1547, %v1524, %v765
    %v1558 = vsel %vm1547, %v1525, %v767
    %v1559 = vsel %vm1547, %v1526, %v769
    %v1560 = vsel %vm1547, %v1527, %v771
    %v1561 = vsel %vm1547, %v1528, %v773
    %v1562 = vsel %vm1547, %v1529, %v775
    %v1563 = vsel %vm1547, %v1530, %v777
    %v1564 = vsel %vm1547, %v1531, %v779
    %v1565 = vsel %vm1547, %v1532, %v781
    %v1566 = vsel %vm1547, %v1533, %v783
    %v1567 = vsel %vm1547, %v1534, %v785
    %v1568 = vsel %vm1547, %v1535, %v787
    %v1569 = vsel %vm1547, %v1536, %v789
    %v1570 = vsel %vm1547, %v1537, %v791
    %v1571 = vsel %vm1547, %v1538, %v793
    %v1572 = vsel %vm1547, %v1539, %v795
    %v1573 = vsel %vm1547, %v1540, %v797
    %v1574 = vsel %vm1547, %v1541, %v799
    %v1575 = vsel %vm1547, %v1542, %v801
    %v1576 = vsel %vm1547, %v1543, %v803
    %v1577 = vsel %vm1547, %v1544, %v805
    %v1578 = vsel %vm1547, %v1545, %v807
    %v1579 = vsel %vm1547, %v1546, %v809
    %vm1580 = vcmask 31744
    %v1581 = vsel %vm1580, %v1548, %v875
    %v1582 = vsel %vm1580, %v1549, %v877
    %v1583 = vsel %vm1580, %v1550, %v879
    %v1584 = vsel %vm1580, %v1551, %v881
    %v1585 = vsel %vm1580, %v1552, %v883
    %v1586 = vsel %vm1580, %v1553, %v885
    %v1587 = vsel %vm1580, %v1554, %v887
    %v1588 = vsel %vm1580, %v1555, %v889
    %v1589 = vsel %vm1580, %v1556, %v891
    %v1590 = vsel %vm1580, %v1557, %v893
    %v1591 = vsel %vm1580, %v1558, %v895
    %v1592 = vsel %vm1580, %v1559, %v897
    %v1593 = vsel %vm1580, %v1560, %v899
    %v1594 = vsel %vm1580, %v1561, %v901
    %v1595 = vsel %vm1580, %v1562, %v903
    %v1596 = vsel %vm1580, %v1563, %v905
    %v1597 = vsel %vm1580, %v1564, %v907
    %v1598 = vsel %vm1580, %v1565, %v909
    %v1599 = vsel %vm1580, %v1566, %v911
    %v1600 = vsel %vm1580, %v1567, %v913
    %v1601 = vsel %vm1580, %v1568, %v915
    %v1602 = vsel %vm1580, %v1569, %v917
    %v1603 = vsel %vm1580, %v1570, %v919
    %v1604 = vsel %vm1580, %v1571, %v921
    %v1605 = vsel %vm1580, %v1572, %v923
    %v1606 = vsel %vm1580, %v1573, %v925
    %v1607 = vsel %vm1580, %v1574, %v927
    %v1608 = vsel %vm1580, %v1575, %v929
    %v1609 = vsel %vm1580, %v1576, %v931
    %v1610 = vsel %vm1580, %v1577, %v933
    %v1611 = vsel %vm1580, %v1578, %v935
    %v1612 = vsel %vm1580, %v1579, %v937
    %vm1613 = vcmask 39936
    %v1614 = vsel %vm1613, %v1581, %v1003
    %v1615 = vsel %vm1613, %v1582, %v1005
    %v1616 = vsel %vm1613, %v1583, %v1007
    %v1617 = vsel %vm1613, %v1584, %v1009
    %v1618 = vsel %vm1613, %v1585, %v1011
    %v1619 = vsel %vm1613, %v1586, %v1013
    %v1620 = vsel %vm1613, %v1587, %v1015
    %v1621 = vsel %vm1613, %v1588, %v1017
    %v1622 = vsel %vm1613, %v1589, %v1019
    %v1623 = vsel %vm1613, %v1590, %v1021
    %v1624 = vsel %vm1613, %v1591, %v1023
    %v1625 = vsel %vm1613, %v1592, %v1025
    %v1626 = vsel %vm1613, %v1593, %v1027
    %v1627 = vsel %vm1613, %v1594, %v1029
    %v1628 = vsel %vm1613, %v1595, %v1031
    %v1629 = vsel %vm1613, %v1596, %v1033
    %v1630 = vsel %vm1613, %v1597, %v1035
    %v1631 = vsel %vm1613, %v1598, %v1037
    %v1632 = vsel %vm1613, %v1599, %v1039
    %v1633 = vsel %vm1613, %v1600, %v1041
    %v1634 = vsel %vm1613, %v1601, %v1043
    %v1635 = vsel %vm1613, %v1602, %v1045
    %v1636 = vsel %vm1613, %v1603, %v1047
    %v1637 = vsel %vm1613, %v1604, %v1049
    %v1638 = vsel %vm1613, %v1605, %v1051
    %v1639 = vsel %vm1613, %v1606, %v1053
    %v1640 = vsel %vm1613, %v1607, %v1055
    %v1641 = vsel %vm1613, %v1608, %v1057
    %v1642 = vsel %vm1613, %v1609, %v1059
    %v1643 = vsel %vm1613, %v1610, %v1061
    %v1644 = vsel %vm1613, %v1611, %v1063
    %v1645 = vsel %vm1613, %v1612, %v1065
    %vm1646 = vcmask 48128
    %v1647 = vsel %vm1646, %v1614, %v1131
    %v1648 = vsel %vm1646, %v1615, %v1133
    %v1649 = vsel %vm1646, %v1616, %v1135
    %v1650 = vsel %vm1646, %v1617, %v1137
    %v1651 = vsel %vm1646, %v1618, %v1139
    %v1652 = vsel %vm1646, %v1619, %v1141
    %v1653 = vsel %vm1646, %v1620, %v1143
    %v1654 = vsel %vm1646, %v1621, %v1145
    %v1655 = vsel %vm1646, %v1622, %v1147
    %v1656 = vsel %vm1646, %v1623, %v1149
    %v1657 = vsel %vm1646, %v1624, %v1151
    %v1658 = vsel %vm1646, %v1625, %v1153
    %v1659 = vsel %vm1646, %v1626, %v1155
    %v1660 = vsel %vm1646, %v1627, %v1157
    %v1661 = vsel %vm1646, %v1628, %v1159
    %v1662 = vsel %vm1646, %v1629, %v1161
    %v1663 = vsel %vm1646, %v1630, %v1163
    %v1664 = vsel %vm1646, %v1631, %v1165
    %v1665 = vsel %vm1646, %v1632, %v1167
    %v1666 = vsel %vm1646, %v1633, %v1169
    %v1667 = vsel %vm1646, %v1634, %v1171
    %v1668 = vsel %vm1646, %v1635, %v1173
    %v1669 = vsel %vm1646, %v1636, %v1175
    %v1670 = vsel %vm1646, %v1637, %v1177
    %v1671 = vsel %vm1646, %v1638, %v1179
    %v1672 = vsel %vm1646, %v1639, %v1181
    %v1673 = vsel %vm1646, %v1640, %v1183
    %v1674 = vsel %vm1646, %v1641, %v1185
    %v1675 = vsel %vm1646, %v1642, %v1187
    %v1676 = vsel %vm1646, %v1643, %v1189
    %v1677 = vsel %vm1646, %v1644, %v1191
    %v1678 = vsel %vm1646, %v1645, %v1193
    %vm1679 = vcmask 56320
    %v1680 = vsel %vm1679, %v1647, %v1259
    %v1681 = vsel %vm1679, %v1648, %v1261
    %v1682 = vsel %vm1679, %v1649, %v1263
    %v1683 = vsel %vm1679, %v1650, %v1265
    %v1684 = vsel %vm1679, %v1651, %v1267
    %v1685 = vsel %vm1679, %v1652, %v1269
    %v1686 = vsel %vm1679, %v1653, %v1271
    %v1687 = vsel %vm1679, %v1654, %v1273
    %v1688 = vsel %vm1679, %v1655, %v1275
    %v1689 = vsel %vm1679, %v1656, %v1277
    %v1690 = vsel %vm1679, %v1657, %v1279
    %v1691 = vsel %vm1679, %v1658, %v1281
    %v1692 = vsel %vm1679, %v1659, %v1283
    %v1693 = vsel %vm1679, %v1660, %v1285
    %v1694 = vsel %vm1679, %v1661, %v1287
    %v1695 = vsel %vm1679, %v1662, %v1289
    %v1696 = vsel %vm1679, %v1663, %v1291
    %v1697 = vsel %vm1679, %v1664, %v1293
    %v1698 = vsel %vm1679, %v1665, %v1295
    %v1699 = vsel %vm1679, %v1666, %v1297
    %v1700 = vsel %vm1679, %v1667, %v1299
    %v1701 = vsel %vm1679, %v1668, %v1301
    %v1702 = vsel %vm1679, %v1669, %v1303
    %v1703 = vsel %vm1679, %v1670, %v1305
    %v1704 = vsel %vm1679, %v1671, %v1307
    %v1705 = vsel %vm1679, %v1672, %v1309
    %v1706 = vsel %vm1679, %v1673, %v1311
    %v1707 = vsel %vm1679, %v1674, %v1313
    %v1708 = vsel %vm1679, %v1675, %v1315
    %v1709 = vsel %vm1679, %v1676, %v1317
    %v1710 = vsel %vm1679, %v1677, %v1319
    %v1711 = vsel %vm1679, %v1678, %v1321
    %vm1712 = vcmask 64512
    %v1713 = vsel %vm1712, %v1680, %v1387
    %v1714 = vsel %vm1712, %v1681, %v1389
    %v1715 = vsel %vm1712, %v1682, %v1391
    %v1716 = vsel %vm1712, %v1683, %v1393
    %v1717 = vsel %vm1712, %v1684, %v1395
    %v1718 = vsel %vm1712, %v1685, %v1397
    %v1719 = vsel %vm1712, %v1686, %v1399
    %v1720 = vsel %vm1712, %v1687, %v1401
    %v1721 = vsel %vm1712, %v1688, %v1403
    %v1722 = vsel %vm1712, %v1689, %v1405
    %v1723 = vsel %vm1712, %v1690, %v1407
    %v1724 = vsel %vm1712, %v1691, %v1409
    %v1725 = vsel %vm1712, %v1692, %v1411
    %v1726 = vsel %vm1712, %v1693, %v1413
    %v1727 = vsel %vm1712, %v1694, %v1415
    %v1728 = vsel %vm1712, %v1695, %v1417
    %v1729 = vsel %vm1712, %v1696, %v1419
    %v1730 = vsel %vm1712, %v1697, %v1421
    %v1731 = vsel %vm1712, %v1698, %v1423
    %v1732 = vsel %vm1712, %v1699, %v1425
    %v1733 = vsel %vm1712, %v1700, %v1427
    %v1734 = vsel %vm1712, %v1701, %v1429
    %v1735 = vsel %vm1712, %v1702, %v1431
    %v1736 = vsel %vm1712, %v1703, %v1433
    %v1737 = vsel %vm1712, %v1704, %v1435
    %v1738 = vsel %vm1712, %v1705, %v1437
    %v1739 = vsel %vm1712, %v1706, %v1439
    %v1740 = vsel %vm1712, %v1707, %v1441
    %v1741 = vsel %vm1712, %v1708, %v1443
    %v1742 = vsel %vm1712, %v1709, %v1445
    %v1743 = vsel %vm1712, %v1710, %v1447
    %v1744 = vsel %vm1712, %v1711, %v1449
    %v1745 = vpack.c.bf16 %v1714, %v1713
    %v1746 = vpack.c.bf16 %v1716, %v1715
    %v1747 = vpack.c.bf16 %v1718, %v1717
    %v1748 = vpack.c.bf16 %v1720, %v1719
    %v1749 = vpack.c.bf16 %v1722, %v1721
    %v1750 = vpack.c.bf16 %v1724, %v1723
    %v1751 = vpack.c.bf16 %v1726, %v1725
    %v1752 = vpack.c.bf16 %v1728, %v1727
    %v1753 = vpack.c.bf16 %v1730, %v1729
    %v1754 = vpack.c.bf16 %v1732, %v1731
    %v1755 = vpack.c.bf16 %v1734, %v1733
    %v1756 = vpack.c.bf16 %v1736, %v1735
    %v1757 = vpack.c.bf16 %v1738, %v1737
    %v1758 = vpack.c.bf16 %v1740, %v1739
    %v1759 = vpack.c.bf16 %v1742, %v1741
    %v1760 = vpack.c.bf16 %v1744, %v1743
    %v1761 = vld [vmem:[%s1] sm:$0xf]
    %v1762 = vld [vmem:[%s1 + $0x4] sm:$0x1]
    %v1763 = vld [vmem:[%s2] sm:$0x1]
    %v1765 = vperm.slane %v1763, 0
    %v1769 = vunpack.c.l.b16 %v1761
    %v1770 = vunpack.c.l.b16 %v1762
    %v1771 = vpack.c.b16 %v1770, %v1769
    %vm1772 = vcmask 72704
    %v1774 = vsel %vm1772, %v1745, 0
    %v1777 = vsel %vm1772, %v1746, 0
    %v1780 = vsel %vm1772, %v1747, 0
    %v1783 = vsel %vm1772, %v1748, 0
    %v1786 = vsel %vm1772, %v1749, 0
    %v1789 = vsel %vm1772, %v1750, 0
    %v1792 = vsel %vm1772, %v1751, 0
    %v1795 = vsel %vm1772, %v1752, 0
    %v1798 = vsel %vm1772, %v1753, 0
    %v1801 = vsel %vm1772, %v1754, 0
    %v1804 = vsel %vm1772, %v1755, 0
    %v1807 = vsel %vm1772, %v1756, 0
    %v1810 = vsel %vm1772, %v1757, 0
    %v1813 = vsel %vm1772, %v1758, 0
    %v1816 = vsel %vm1772, %v1759, 0
    %v1819 = vsel %vm1772, %v1760, 0
    %vm1821 = vcmask 1043456
    %vm1822 = vcmask 1044480
    %v1823 = vsel %vm1821, 4294967295, 65535
    %v1824 = vsel %vm1822, %v1823, 0
    %v1826 = vand.u32 %v1771, %v1824
    %1828 = vmatpush.bf16.msra.mxu0 0
    %1829 = vmatpush.bf16.msra.mxu0 0
    %1830 = vmatpush.bf16.msra.mxu0 0
    %1831 = vmatpush.bf16.msra.mxu0 0
    %1832 = vmatpush.bf16.msra.mxu0 0
    %1833 = vmatpush.bf16.msra.mxu0 0
    %1834 = vmatpush.bf16.msra.mxu0 0
    %1835 = vmatpush.bf16.msra.mxu0 %v1826
    %1836 = vmatmul.bf16.gmra.mxu0 %v1774
    %v1837 = vpop.f32.mrf.mxu0
    %v1838 = vadd.f32 %v1765, %v1837
    %v1839 = vpop.f32.mrf.mxu0
    %v1840 = vadd.f32 %v1765, %v1839
    %1841 = vmatmul.bf16.gmra.mxu0 %v1777
    %v1842 = vpop.f32.mrf.mxu0
    %v1843 = vadd.f32 %v1765, %v1842
    %v1844 = vpop.f32.mrf.mxu0
    %v1845 = vadd.f32 %v1765, %v1844
    %1846 = vmatmul.bf16.gmra.mxu0 %v1780
    %v1847 = vpop.f32.mrf.mxu0
    %v1848 = vadd.f32 %v1765, %v1847
    %v1849 = vpop.f32.mrf.mxu0
    %v1850 = vadd.f32 %v1765, %v1849
    %1851 = vmatmul.bf16.gmra.mxu0 %v1783
    %v1852 = vpop.f32.mrf.mxu0
    %v1853 = vadd.f32 %v1765, %v1852
    %v1854 = vpop.f32.mrf.mxu0
    %v1855 = vadd.f32 %v1765, %v1854
    %1856 = vmatmul.bf16.gmra.mxu0 %v1786
    %v1857 = vpop.f32.mrf.mxu0
    %v1858 = vadd.f32 %v1765, %v1857
    %v1859 = vpop.f32.mrf.mxu0
    %v1860 = vadd.f32 %v1765, %v1859
    %1861 = vmatmul.bf16.gmra.mxu0 %v1789
    %v1862 = vpop.f32.mrf.mxu0
    %v1863 = vadd.f32 %v1765, %v1862
    %v1864 = vpop.f32.mrf.mxu0
    %v1865 = vadd.f32 %v1765, %v1864
    %1866 = vmatmul.bf16.gmra.mxu0 %v1792
    %v1867 = vpop.f32.mrf.mxu0
    %v1868 = vadd.f32 %v1765, %v1867
    %v1869 = vpop.f32.mrf.mxu0
    %v1870 = vadd.f32 %v1765, %v1869
    %1871 = vmatmul.bf16.gmra.mxu0 %v1795
    %v1872 = vpop.f32.mrf.mxu0
    %v1873 = vadd.f32 %v1765, %v1872
    %v1874 = vpop.f32.mrf.mxu0
    %v1875 = vadd.f32 %v1765, %v1874
    %1876 = vmatmul.bf16.gmra.mxu0 %v1798
    %v1877 = vpop.f32.mrf.mxu0
    %v1878 = vadd.f32 %v1765, %v1877
    %v1879 = vpop.f32.mrf.mxu0
    %v1880 = vadd.f32 %v1765, %v1879
    %1881 = vmatmul.bf16.gmra.mxu0 %v1801
    %v1882 = vpop.f32.mrf.mxu0
    %v1883 = vadd.f32 %v1765, %v1882
    %v1884 = vpop.f32.mrf.mxu0
    %v1885 = vadd.f32 %v1765, %v1884
    %1886 = vmatmul.bf16.gmra.mxu0 %v1804
    %v1887 = vpop.f32.mrf.mxu0
    %v1888 = vadd.f32 %v1765, %v1887
    %v1889 = vpop.f32.mrf.mxu0
    %v1890 = vadd.f32 %v1765, %v1889
    %1891 = vmatmul.bf16.gmra.mxu0 %v1807
    %v1892 = vpop.f32.mrf.mxu0
    %v1893 = vadd.f32 %v1765, %v1892
    %v1894 = vpop.f32.mrf.mxu0
    %v1895 = vadd.f32 %v1765, %v1894
    %1896 = vmatmul.bf16.gmra.mxu0 %v1810
    %v1897 = vpop.f32.mrf.mxu0
    %v1898 = vadd.f32 %v1765, %v1897
    %v1899 = vpop.f32.mrf.mxu0
    %v1900 = vadd.f32 %v1765, %v1899
    %1901 = vmatmul.bf16.gmra.mxu0 %v1813
    %v1902 = vpop.f32.mrf.mxu0
    %v1903 = vadd.f32 %v1765, %v1902
    %v1904 = vpop.f32.mrf.mxu0
    %v1905 = vadd.f32 %v1765, %v1904
    %1906 = vmatmul.bf16.gmra.mxu0 %v1816
    %v1907 = vpop.f32.mrf.mxu0
    %v1908 = vadd.f32 %v1765, %v1907
    %v1909 = vpop.f32.mrf.mxu0
    %v1910 = vadd.f32 %v1765, %v1909
    %1911 = vmatmul.bf16.gmra.mxu0 %v1819
    %v1912 = vpop.f32.mrf.mxu0
    %v1913 = vadd.f32 %v1765, %v1912
    %v1914 = vpop.f32.mrf.mxu0
    %v1915 = vadd.f32 %v1765, %v1914
    %1916 = vdwg.mxu0
    %v1917 = vld [vmem:[%s3] sm:$0x1]
    %v1919 = vperm.slane %v1917, 0
    %v1921 = vmul.f32 %v1838, %v1919
    %v1922 = vmul.f32 %v1840, %v1919
    %v1923 = vmul.f32 %v1843, %v1919
    %v1924 = vmul.f32 %v1845, %v1919
    %v1925 = vmul.f32 %v1848, %v1919
    %v1926 = vmul.f32 %v1850, %v1919
    %v1927 = vmul.f32 %v1853, %v1919
    %v1928 = vmul.f32 %v1855, %v1919
    %v1929 = vmul.f32 %v1858, %v1919
    %v1930 = vmul.f32 %v1860, %v1919
    %v1931 = vmul.f32 %v1863, %v1919
    %v1932 = vmul.f32 %v1865, %v1919
    %v1933 = vmul.f32 %v1868, %v1919
    %v1934 = vmul.f32 %v1870, %v1919
    %v1935 = vmul.f32 %v1873, %v1919
    %v1936 = vmul.f32 %v1875, %v1919
    %v1937 = vmul.f32 %v1878, %v1919
    %v1938 = vmul.f32 %v1880, %v1919
    %v1939 = vmul.f32 %v1883, %v1919
    %v1940 = vmul.f32 %v1885, %v1919
    %v1941 = vmul.f32 %v1888, %v1919
    %v1942 = vmul.f32 %v1890, %v1919
    %v1943 = vmul.f32 %v1893, %v1919
    %v1944 = vmul.f32 %v1895, %v1919
    %v1945 = vmul.f32 %v1898, %v1919
    %v1946 = vmul.f32 %v1900, %v1919
    %v1947 = vmul.f32 %v1903, %v1919
    %v1948 = vmul.f32 %v1905, %v1919
    %v1949 = vmul.f32 %v1908, %v1919
    %v1950 = vmul.f32 %v1910, %v1919
    %v1951 = vmul.f32 %v1913, %v1919
    %v1952 = vmul.f32 %v1915, %v1919
    %v1953 = vld [vmem:[%s4] sm:$0x1]
    %v1955 = vperm.slane %v1953, 0
    %v1957 = vadd.f32 %v1921, %v1955
    %v1958 = vadd.f32 %v1922, %v1955
    %v1959 = vadd.f32 %v1923, %v1955
    %v1960 = vadd.f32 %v1924, %v1955
    %v1961 = vadd.f32 %v1925, %v1955
    %v1962 = vadd.f32 %v1926, %v1955
    %v1963 = vadd.f32 %v1927, %v1955
    %v1964 = vadd.f32 %v1928, %v1955
    %v1965 = vadd.f32 %v1929, %v1955
    %v1966 = vadd.f32 %v1930, %v1955
    %v1967 = vadd.f32 %v1931, %v1955
    %v1968 = vadd.f32 %v1932, %v1955
    %v1969 = vadd.f32 %v1933, %v1955
    %v1970 = vadd.f32 %v1934, %v1955
    %v1971 = vadd.f32 %v1935, %v1955
    %v1972 = vadd.f32 %v1936, %v1955
    %v1973 = vadd.f32 %v1937, %v1955
    %v1974 = vadd.f32 %v1938, %v1955
    %v1975 = vadd.f32 %v1939, %v1955
    %v1976 = vadd.f32 %v1940, %v1955
    %v1977 = vadd.f32 %v1941, %v1955
    %v1978 = vadd.f32 %v1942, %v1955
    %v1979 = vadd.f32 %v1943, %v1955
    %v1980 = vadd.f32 %v1944, %v1955
    %v1981 = vadd.f32 %v1945, %v1955
    %v1982 = vadd.f32 %v1946, %v1955
    %v1983 = vadd.f32 %v1947, %v1955
    %v1984 = vadd.f32 %v1948, %v1955
    %v1985 = vadd.f32 %v1949, %v1955
    %v1986 = vadd.f32 %v1950, %v1955
    %v1987 = vadd.f32 %v1951, %v1955
    %v1988 = vadd.f32 %v1952, %v1955
    %v1989 = vpack.c.bf16 %v1958, %v1957
    %v1990 = vpack.c.bf16 %v1960, %v1959
    %v1991 = vpack.c.bf16 %v1962, %v1961
    %v1992 = vpack.c.bf16 %v1964, %v1963
    %v1993 = vpack.c.bf16 %v1966, %v1965
    %v1994 = vpack.c.bf16 %v1968, %v1967
    %v1995 = vpack.c.bf16 %v1970, %v1969
    %v1996 = vpack.c.bf16 %v1972, %v1971
    %v1997 = vpack.c.bf16 %v1974, %v1973
    %v1998 = vpack.c.bf16 %v1976, %v1975
    %v1999 = vpack.c.bf16 %v1978, %v1977
    %v2000 = vpack.c.bf16 %v1980, %v1979
    %v2001 = vpack.c.bf16 %v1982, %v1981
    %v2002 = vpack.c.bf16 %v1984, %v1983
    %v2003 = vpack.c.bf16 %v1986, %v1985
    %v2004 = vpack.c.bf16 %v1988, %v1987
    %v2005 = vld [vmem:[%s5] sm:$0xf]
    %v2006 = vld [vmem:[%s6] sm:$0x1]
    %v2008 = vperm.slane %v2006, 0
    %v2011 = vsel %vm1712, %v1989, 0
    %v2014 = vsel %vm1712, %v1990, 0
    %v2017 = vsel %vm1712, %v1991, 0
    %v2020 = vsel %vm1712, %v1992, 0
    %v2023 = vsel %vm1712, %v1993, 0
    %v2026 = vsel %vm1712, %v1994, 0
    %v2029 = vsel %vm1712, %v1995, 0
    %v2032 = vsel %vm1712, %v1996, 0
    %v2035 = vsel %vm1712, %v1997, 0
    %v2038 = vsel %vm1712, %v1998, 0
    %v2041 = vsel %vm1712, %v1999, 0
    %v2044 = vsel %vm1712, %v2000, 0
    %v2047 = vsel %vm1712, %v2001, 0
    %v2050 = vsel %vm1712, %v2002, 0
    %v2053 = vsel %vm1712, %v2003, 0
    %v2056 = vsel %vm1712, %v2004, 0
    %v2059 = vsel %vm1821, %v2005, 0
    %2061 = vmatpush.bf16.msra.mxu0 0
    %2062 = vmatpush.bf16.msra.mxu0 0
    %2063 = vmatpush.bf16.msra.mxu0 0
    %2064 = vmatpush.bf16.msra.mxu0 0
    %2065 = vmatpush.bf16.msra.mxu0 0
    %2066 = vmatpush.bf16.msra.mxu0 0
    %2067 = vmatpush.bf16.msra.mxu0 0
    %2068 = vmatpush.bf16.msra.mxu0 %v2059
    %2069 = vmatmul.bf16.gmra.mxu0 %v2011
    %v2070 = vpop.f32.mrf.mxu0
    %v2071 = vadd.f32 %v2008, %v2070
    %v2072 = vpop.f32.mrf.mxu0
    %v2073 = vadd.f32 %v2008, %v2072
    %2074 = vmatmul.bf16.gmra.mxu0 %v2014
    %v2075 = vpop.f32.mrf.mxu0
    %v2076 = vadd.f32 %v2008, %v2075
    %v2077 = vpop.f32.mrf.mxu0
    %v2078 = vadd.f32 %v2008, %v2077
    %2079 = vmatmul.bf16.gmra.mxu0 %v2017
    %v2080 = vpop.f32.mrf.mxu0
    %v2081 = vadd.f32 %v2008, %v2080
    %v2082 = vpop.f32.mrf.mxu0
    %v2083 = vadd.f32 %v2008, %v2082
    %2084 = vmatmul.bf16.gmra.mxu0 %v2020
    %v2085 = vpop.f32.mrf.mxu0
    %v2086 = vadd.f32 %v2008, %v2085
    %v2087 = vpop.f32.mrf.mxu0
    %v2088 = vadd.f32 %v2008, %v2087
    %2089 = vmatmul.bf16.gmra.mxu0 %v2023
    %v2090 = vpop.f32.mrf.mxu0
    %v2091 = vadd.f32 %v2008, %v2090
    %v2092 = vpop.f32.mrf.mxu0
    %v2093 = vadd.f32 %v2008, %v2092
    %2094 = vmatmul.bf16.gmra.mxu0 %v2026
    %v2095 = vpop.f32.mrf.mxu0
    %v2096 = vadd.f32 %v2008, %v2095
    %v2097 = vpop.f32.mrf.mxu0
    %v2098 = vadd.f32 %v2008, %v2097
    %2099 = vmatmul.bf16.gmra.mxu0 %v2029
    %v2100 = vpop.f32.mrf.mxu0
    %v2101 = vadd.f32 %v2008, %v2100
    %v2102 = vpop.f32.mrf.mxu0
    %v2103 = vadd.f32 %v2008, %v2102
    %2104 = vmatmul.bf16.gmra.mxu0 %v2032
    %v2105 = vpop.f32.mrf.mxu0
    %v2106 = vadd.f32 %v2008, %v2105
    %v2107 = vpop.f32.mrf.mxu0
    %v2108 = vadd.f32 %v2008, %v2107
    %2109 = vmatmul.bf16.gmra.mxu0 %v2035
    %v2110 = vpop.f32.mrf.mxu0
    %v2111 = vadd.f32 %v2008, %v2110
    %v2112 = vpop.f32.mrf.mxu0
    %v2113 = vadd.f32 %v2008, %v2112
    %2114 = vmatmul.bf16.gmra.mxu0 %v2038
    %v2115 = vpop.f32.mrf.mxu0
    %v2116 = vadd.f32 %v2008, %v2115
    %v2117 = vpop.f32.mrf.mxu0
    %v2118 = vadd.f32 %v2008, %v2117
    %2119 = vmatmul.bf16.gmra.mxu0 %v2041
    %v2120 = vpop.f32.mrf.mxu0
    %v2121 = vadd.f32 %v2008, %v2120
    %v2122 = vpop.f32.mrf.mxu0
    %v2123 = vadd.f32 %v2008, %v2122
    %2124 = vmatmul.bf16.gmra.mxu0 %v2044
    %v2125 = vpop.f32.mrf.mxu0
    %v2126 = vadd.f32 %v2008, %v2125
    %v2127 = vpop.f32.mrf.mxu0
    %v2128 = vadd.f32 %v2008, %v2127
    %2129 = vmatmul.bf16.gmra.mxu0 %v2047
    %v2130 = vpop.f32.mrf.mxu0
    %v2131 = vadd.f32 %v2008, %v2130
    %v2132 = vpop.f32.mrf.mxu0
    %v2133 = vadd.f32 %v2008, %v2132
    %2134 = vmatmul.bf16.gmra.mxu0 %v2050
    %v2135 = vpop.f32.mrf.mxu0
    %v2136 = vadd.f32 %v2008, %v2135
    %v2137 = vpop.f32.mrf.mxu0
    %v2138 = vadd.f32 %v2008, %v2137
    %2139 = vmatmul.bf16.gmra.mxu0 %v2053
    %v2140 = vpop.f32.mrf.mxu0
    %v2141 = vadd.f32 %v2008, %v2140
    %v2142 = vpop.f32.mrf.mxu0
    %v2143 = vadd.f32 %v2008, %v2142
    %2144 = vmatmul.bf16.gmra.mxu0 %v2056
    %v2145 = vpop.f32.mrf.mxu0
    %v2146 = vadd.f32 %v2008, %v2145
    %v2147 = vpop.f32.mrf.mxu0
    %v2148 = vadd.f32 %v2008, %v2147
    %2149 = vdwg.mxu0
    %v2150 = vxor.u32 %v1957, 2147483648
    %v2151 = vxor.u32 %v1958, 2147483648
    %v2152 = vxor.u32 %v1959, 2147483648
    %v2153 = vxor.u32 %v1960, 2147483648
    %v2154 = vxor.u32 %v1961, 2147483648
    %v2155 = vxor.u32 %v1962, 2147483648
    %v2156 = vxor.u32 %v1963, 2147483648
    %v2157 = vxor.u32 %v1964, 2147483648
    %v2158 = vxor.u32 %v1965, 2147483648
    %v2159 = vxor.u32 %v1966, 2147483648
    %v2160 = vxor.u32 %v1967, 2147483648
    %v2161 = vxor.u32 %v1968, 2147483648
    %v2162 = vxor.u32 %v1969, 2147483648
    %v2163 = vxor.u32 %v1970, 2147483648
    %v2164 = vxor.u32 %v1971, 2147483648
    %v2165 = vxor.u32 %v1972, 2147483648
    %v2166 = vxor.u32 %v1973, 2147483648
    %v2167 = vxor.u32 %v1974, 2147483648
    %v2168 = vxor.u32 %v1975, 2147483648
    %v2169 = vxor.u32 %v1976, 2147483648
    %v2170 = vxor.u32 %v1977, 2147483648
    %v2171 = vxor.u32 %v1978, 2147483648
    %v2172 = vxor.u32 %v1979, 2147483648
    %v2173 = vxor.u32 %v1980, 2147483648
    %v2174 = vxor.u32 %v1981, 2147483648
    %v2175 = vxor.u32 %v1982, 2147483648
    %v2176 = vxor.u32 %v1983, 2147483648
    %v2177 = vxor.u32 %v1984, 2147483648
    %v2178 = vxor.u32 %v1985, 2147483648
    %v2179 = vxor.u32 %v1986, 2147483648
    %v2180 = vxor.u32 %v1987, 2147483648
    %v2181 = vxor.u32 %v1988, 2147483648
    %v2182 = vmul.f32 %v2150, 1.442695
    %v2183 = vpow.pop %v2182
    %v2184 = vmul.f32 %v2151, 1.442695
    %v2185 = vpow.pop %v2184
    %v2186 = vmul.f32 %v2152, 1.442695
    %v2187 = vpow.pop %v2186
    %v2188 = vmul.f32 %v2153, 1.442695
    %v2189 = vpow.pop %v2188
    %v2190 = vmul.f32 %v2154, 1.442695
    %v2191 = vpow.pop %v2190
    %v2192 = vmul.f32 %v2155, 1.442695
    %v2193 = vpow.pop %v2192
    %v2194 = vmul.f32 %v2156, 1.442695
    %v2195 = vpow.pop %v2194
    %v2196 = vmul.f32 %v2157, 1.442695
    %v2197 = vpow.pop %v2196
    %v2198 = vmul.f32 %v2158, 1.442695
    %v2199 = vpow.pop %v2198
    %v2200 = vmul.f32 %v2159, 1.442695
    %v2201 = vpow.pop %v2200
    %v2202 = vmul.f32 %v2160, 1.442695
    %v2203 = vpow.pop %v2202
    %v2204 = vmul.f32 %v2161, 1.442695
    %v2205 = vpow.pop %v2204
    %v2206 = vmul.f32 %v2162, 1.442695
    %v2207 = vpow.pop %v2206
    %v2208 = vmul.f32 %v2163, 1.442695
    %v2209 = vpow.pop %v2208
    %v2210 = vmul.f32 %v2164, 1.442695
    %v2211 = vpow.pop %v2210
    %v2212 = vmul.f32 %v2165, 1.442695
    %v2213 = vpow.pop %v2212
    %v2214 = vmul.f32 %v2166, 1.442695
    %v2215 = vpow.pop %v2214
    %v2216 = vmul.f32 %v2167, 1.442695
    %v2217 = vpow.pop %v2216
    %v2218 = vmul.f32 %v2168, 1.442695
    %v2219 = vpow.pop %v2218
    %v2220 = vmul.f32 %v2169, 1.442695
    %v2221 = vpow.pop %v2220
    %v2222 = vmul.f32 %v2170, 1.442695
    %v2223 = vpow.pop %v2222
    %v2224 = vmul.f32 %v2171, 1.442695
    %v2225 = vpow.pop %v2224
    %v2226 = vmul.f32 %v2172, 1.442695
    %v2227 = vpow.pop %v2226
    %v2228 = vmul.f32 %v2173, 1.442695
    %v2229 = vpow.pop %v2228
    %v2230 = vmul.f32 %v2174, 1.442695
    %v2231 = vpow.pop %v2230
    %v2232 = vmul.f32 %v2175, 1.442695
    %v2233 = vpow.pop %v2232
    %v2234 = vmul.f32 %v2176, 1.442695
    %v2235 = vpow.pop %v2234
    %v2236 = vmul.f32 %v2177, 1.442695
    %v2237 = vpow.pop %v2236
    %v2238 = vmul.f32 %v2178, 1.442695
    %v2239 = vpow.pop %v2238
    %v2240 = vmul.f32 %v2179, 1.442695
    %v2241 = vpow.pop %v2240
    %v2242 = vmul.f32 %v2180, 1.442695
    %v2243 = vpow.pop %v2242
    %v2244 = vmul.f32 %v2181, 1.442695
    %v2245 = vpow.pop %v2244
    %v2246 = vadd.f32 %v2183, 1.0
    %v2247 = vadd.f32 %v2185, 1.0
    %v2248 = vadd.f32 %v2187, 1.0
    %v2249 = vadd.f32 %v2189, 1.0
    %v2250 = vadd.f32 %v2191, 1.0
    %v2251 = vadd.f32 %v2193, 1.0
    %v2252 = vadd.f32 %v2195, 1.0
    %v2253 = vadd.f32 %v2197, 1.0
    %v2254 = vadd.f32 %v2199, 1.0
    %v2255 = vadd.f32 %v2201, 1.0
    %v2256 = vadd.f32 %v2203, 1.0
    %v2257 = vadd.f32 %v2205, 1.0
    %v2258 = vadd.f32 %v2207, 1.0
    %v2259 = vadd.f32 %v2209, 1.0
    %v2260 = vadd.f32 %v2211, 1.0
    %v2261 = vadd.f32 %v2213, 1.0
    %v2262 = vadd.f32 %v2215, 1.0
    %v2263 = vadd.f32 %v2217, 1.0
    %v2264 = vadd.f32 %v2219, 1.0
    %v2265 = vadd.f32 %v2221, 1.0
    %v2266 = vadd.f32 %v2223, 1.0
    %v2267 = vadd.f32 %v2225, 1.0
    %v2268 = vadd.f32 %v2227, 1.0
    %v2269 = vadd.f32 %v2229, 1.0
    %v2270 = vadd.f32 %v2231, 1.0
    %v2271 = vadd.f32 %v2233, 1.0
    %v2272 = vadd.f32 %v2235, 1.0
    %v2273 = vadd.f32 %v2237, 1.0
    %v2274 = vadd.f32 %v2239, 1.0
    %v2275 = vadd.f32 %v2241, 1.0
    %v2276 = vadd.f32 %v2243, 1.0
    %v2277 = vadd.f32 %v2245, 1.0
    %v2278 = vrcp.pop %v2246
    %v2279 = vmul.f32 %v2246, %v2278
    %v2280 = vsub.f32 1.0, %v2279
    %v2281 = vmul.f32 %v2278, %v2280
    %v2282 = vadd.f32 %v2278, %v2281
    %vm2283 = vweird.f32 %v2246
    %vm2284 = vweird.f32 %v2278
    %vm2285 = vmor %vm2283, %vm2284
    %v2286 = vsel %vm2285, %v2278, %v2282
    %v2287 = vand.u32 2147483647, %v2246
    %vm2288 = vcmp.eq.f32.partialorder %v2287, 8.507059e+37
    %v2289 = vand.u32 %v2246, 2147483648
    %v2290 = vor.u32 1.1754944e-38, %v2289
    %v2291 = vsel %vm2288, %v2290, %v2286
    %v2292 = vmul.f32 1.0, %v2291
    %v2293 = vrcp.pop %v2247
    %v2294 = vmul.f32 %v2247, %v2293
    %v2295 = vsub.f32 1.0, %v2294
    %v2296 = vmul.f32 %v2293, %v2295
    %v2297 = vadd.f32 %v2293, %v2296
    %vm2298 = vweird.f32 %v2247
    %vm2299 = vweird.f32 %v2293
    %vm2300 = vmor %vm2298, %vm2299
    %v2301 = vsel %vm2300, %v2293, %v2297
    %v2302 = vand.u32 2147483647, %v2247
    %vm2303 = vcmp.eq.f32.partialorder %v2302, 8.507059e+37
    %v2304 = vand.u32 %v2247, 2147483648
    %v2305 = vor.u32 1.1754944e-38, %v2304
    %v2306 = vsel %vm2303, %v2305, %v2301
    %v2307 = vmul.f32 1.0, %v2306
    %v2308 = vrcp.pop %v2248
    %v2309 = vmul.f32 %v2248, %v2308
    %v2310 = vsub.f32 1.0, %v2309
    %v2311 = vmul.f32 %v2308, %v2310
    %v2312 = vadd.f32 %v2308, %v2311
    %vm2313 = vweird.f32 %v2248
    %vm2314 = vweird.f32 %v2308
    %vm2315 = vmor %vm2313, %vm2314
    %v2316 = vsel %vm2315, %v2308, %v2312
    %v2317 = vand.u32 2147483647, %v2248
    %vm2318 = vcmp.eq.f32.partialorder %v2317, 8.507059e+37
    %v2319 = vand.u32 %v2248, 2147483648
    %v2320 = vor.u32 1.1754944e-38, %v2319
    %v2321 = vsel %vm2318, %v2320, %v2316
    %v2322 = vmul.f32 1.0, %v2321
    %v2323 = vrcp.pop %v2249
    %v2324 = vmul.f32 %v2249, %v2323
    %v2325 = vsub.f32 1.0, %v2324
    %v2326 = vmul.f32 %v2323, %v2325
    %v2327 = vadd.f32 %v2323, %v2326
    %vm2328 = vweird.f32 %v2249
    %vm2329 = vweird.f32 %v2323
    %vm2330 = vmor %vm2328, %vm2329
    %v2331 = vsel %vm2330, %v2323, %v2327
    %v2332 = vand.u32 2147483647, %v2249
    %vm2333 = vcmp.eq.f32.partialorder %v2332, 8.507059e+37
    %v2334 = vand.u32 %v2249, 2147483648
    %v2335 = vor.u32 1.1754944e-38, %v2334
    %v2336 = vsel %vm2333, %v2335, %v2331
    %v2337 = vmul.f32 1.0, %v2336
    %v2338 = vrcp.pop %v2250
    %v2339 = vmul.f32 %v2250, %v2338
    %v2340 = vsub.f32 1.0, %v2339
    %v2341 = vmul.f32 %v2338, %v2340
    %v2342 = vadd.f32 %v2338, %v2341
    %vm2343 = vweird.f32 %v2250
    %vm2344 = vweird.f32 %v2338
    %vm2345 = vmor %vm2343, %vm2344
    %v2346 = vsel %vm2345, %v2338, %v2342
    %v2347 = vand.u32 2147483647, %v2250
    %vm2348 = vcmp.eq.f32.partialorder %v2347, 8.507059e+37
    %v2349 = vand.u32 %v2250, 2147483648
    %v2350 = vor.u32 1.1754944e-38, %v2349
    %v2351 = vsel %vm2348, %v2350, %v2346
    %v2352 = vmul.f32 1.0, %v2351
    %v2353 = vrcp.pop %v2251
    %v2354 = vmul.f32 %v2251, %v2353
    %v2355 = vsub.f32 1.0, %v2354
    %v2356 = vmul.f32 %v2353, %v2355
    %v2357 = vadd.f32 %v2353, %v2356
    %vm2358 = vweird.f32 %v2251
    %vm2359 = vweird.f32 %v2353
    %vm2360 = vmor %vm2358, %vm2359
    %v2361 = vsel %vm2360, %v2353, %v2357
    %v2362 = vand.u32 2147483647, %v2251
    %vm2363 = vcmp.eq.f32.partialorder %v2362, 8.507059e+37
    %v2364 = vand.u32 %v2251, 2147483648
    %v2365 = vor.u32 1.1754944e-38, %v2364
    %v2366 = vsel %vm2363, %v2365, %v2361
    %v2367 = vmul.f32 1.0, %v2366
    %v2368 = vrcp.pop %v2252
    %v2369 = vmul.f32 %v2252, %v2368
    %v2370 = vsub.f32 1.0, %v2369
    %v2371 = vmul.f32 %v2368, %v2370
    %v2372 = vadd.f32 %v2368, %v2371
    %vm2373 = vweird.f32 %v2252
    %vm2374 = vweird.f32 %v2368
    %vm2375 = vmor %vm2373, %vm2374
    %v2376 = vsel %vm2375, %v2368, %v2372
    %v2377 = vand.u32 2147483647, %v2252
    %vm2378 = vcmp.eq.f32.partialorder %v2377, 8.507059e+37
    %v2379 = vand.u32 %v2252, 2147483648
    %v2380 = vor.u32 1.1754944e-38, %v2379
    %v2381 = vsel %vm2378, %v2380, %v2376
    %v2382 = vmul.f32 1.0, %v2381
    %v2383 = vrcp.pop %v2253
    %v2384 = vmul.f32 %v2253, %v2383
    %v2385 = vsub.f32 1.0, %v2384
    %v2386 = vmul.f32 %v2383, %v2385
    %v2387 = vadd.f32 %v2383, %v2386
    %vm2388 = vweird.f32 %v2253
    %vm2389 = vweird.f32 %v2383
    %vm2390 = vmor %vm2388, %vm2389
    %v2391 = vsel %vm2390, %v2383, %v2387
    %v2392 = vand.u32 2147483647, %v2253
    %vm2393 = vcmp.eq.f32.partialorder %v2392, 8.507059e+37
    %v2394 = vand.u32 %v2253, 2147483648
    %v2395 = vor.u32 1.1754944e-38, %v2394
    %v2396 = vsel %vm2393, %v2395, %v2391
    %v2397 = vmul.f32 1.0, %v2396
    %v2398 = vrcp.pop %v2254
    %v2399 = vmul.f32 %v2254, %v2398
    %v2400 = vsub.f32 1.0, %v2399
    %v2401 = vmul.f32 %v2398, %v2400
    %v2402 = vadd.f32 %v2398, %v2401
    %vm2403 = vweird.f32 %v2254
    %vm2404 = vweird.f32 %v2398
    %vm2405 = vmor %vm2403, %vm2404
    %v2406 = vsel %vm2405, %v2398, %v2402
    %v2407 = vand.u32 2147483647, %v2254
    %vm2408 = vcmp.eq.f32.partialorder %v2407, 8.507059e+37
    %v2409 = vand.u32 %v2254, 2147483648
    %v2410 = vor.u32 1.1754944e-38, %v2409
    %v2411 = vsel %vm2408, %v2410, %v2406
    %v2412 = vmul.f32 1.0, %v2411
    %v2413 = vrcp.pop %v2255
    %v2414 = vmul.f32 %v2255, %v2413
    %v2415 = vsub.f32 1.0, %v2414
    %v2416 = vmul.f32 %v2413, %v2415
    %v2417 = vadd.f32 %v2413, %v2416
    %vm2418 = vweird.f32 %v2255
    %vm2419 = vweird.f32 %v2413
    %vm2420 = vmor %vm2418, %vm2419
    %v2421 = vsel %vm2420, %v2413, %v2417
    %v2422 = vand.u32 2147483647, %v2255
    %vm2423 = vcmp.eq.f32.partialorder %v2422, 8.507059e+37
    %v2424 = vand.u32 %v2255, 2147483648
    %v2425 = vor.u32 1.1754944e-38, %v2424
    %v2426 = vsel %vm2423, %v2425, %v2421
    %v2427 = vmul.f32 1.0, %v2426
    %v2428 = vrcp.pop %v2256
    %v2429 = vmul.f32 %v2256, %v2428
    %v2430 = vsub.f32 1.0, %v2429
    %v2431 = vmul.f32 %v2428, %v2430
    %v2432 = vadd.f32 %v2428, %v2431
    %vm2433 = vweird.f32 %v2256
    %vm2434 = vweird.f32 %v2428
    %vm2435 = vmor %vm2433, %vm2434
    %v2436 = vsel %vm2435, %v2428, %v2432
    %v2437 = vand.u32 2147483647, %v2256
    %vm2438 = vcmp.eq.f32.partialorder %v2437, 8.507059e+37
    %v2439 = vand.u32 %v2256, 2147483648
    %v2440 = vor.u32 1.1754944e-38, %v2439
    %v2441 = vsel %vm2438, %v2440, %v2436
    %v2442 = vmul.f32 1.0, %v2441
    %v2443 = vrcp.pop %v2257
    %v2444 = vmul.f32 %v2257, %v2443
    %v2445 = vsub.f32 1.0, %v2444
    %v2446 = vmul.f32 %v2443, %v2445
    %v2447 = vadd.f32 %v2443, %v2446
    %vm2448 = vweird.f32 %v2257
    %vm2449 = vweird.f32 %v2443
    %vm2450 = vmor %vm2448, %vm2449
    %v2451 = vsel %vm2450, %v2443, %v2447
    %v2452 = vand.u32 2147483647, %v2257
    %vm2453 = vcmp.eq.f32.partialorder %v2452, 8.507059e+37
    %v2454 = vand.u32 %v2257, 2147483648
    %v2455 = vor.u32 1.1754944e-38, %v2454
    %v2456 = vsel %vm2453, %v2455, %v2451
    %v2457 = vmul.f32 1.0, %v2456
    %v2458 = vrcp.pop %v2258
    %v2459 = vmul.f32 %v2258, %v2458
    %v2460 = vsub.f32 1.0, %v2459
    %v2461 = vmul.f32 %v2458, %v2460
    %v2462 = vadd.f32 %v2458, %v2461
    %vm2463 = vweird.f32 %v2258
    %vm2464 = vweird.f32 %v2458
    %vm2465 = vmor %vm2463, %vm2464
    %v2466 = vsel %vm2465, %v2458, %v2462
    %v2467 = vand.u32 2147483647, %v2258
    %vm2468 = vcmp.eq.f32.partialorder %v2467, 8.507059e+37
    %v2469 = vand.u32 %v2258, 2147483648
    %v2470 = vor.u32 1.1754944e-38, %v2469
    %v2471 = vsel %vm2468, %v2470, %v2466
    %v2472 = vmul.f32 1.0, %v2471
    %v2473 = vrcp.pop %v2259
    %v2474 = vmul.f32 %v2259, %v2473
    %v2475 = vsub.f32 1.0, %v2474
    %v2476 = vmul.f32 %v2473, %v2475
    %v2477 = vadd.f32 %v2473, %v2476
    %vm2478 = vweird.f32 %v2259
    %vm2479 = vweird.f32 %v2473
    %vm2480 = vmor %vm2478, %vm2479
    %v2481 = vsel %vm2480, %v2473, %v2477
    %v2482 = vand.u32 2147483647, %v2259
    %vm2483 = vcmp.eq.f32.partialorder %v2482, 8.507059e+37
    %v2484 = vand.u32 %v2259, 2147483648
    %v2485 = vor.u32 1.1754944e-38, %v2484
    %v2486 = vsel %vm2483, %v2485, %v2481
    %v2487 = vmul.f32 1.0, %v2486
    %v2488 = vrcp.pop %v2260
    %v2489 = vmul.f32 %v2260, %v2488
    %v2490 = vsub.f32 1.0, %v2489
    %v2491 = vmul.f32 %v2488, %v2490
    %v2492 = vadd.f32 %v2488, %v2491
    %vm2493 = vweird.f32 %v2260
    %vm2494 = vweird.f32 %v2488
    %vm2495 = vmor %vm2493, %vm2494
    %v2496 = vsel %vm2495, %v2488, %v2492
    %v2497 = vand.u32 2147483647, %v2260
    %vm2498 = vcmp.eq.f32.partialorder %v2497, 8.507059e+37
    %v2499 = vand.u32 %v2260, 2147483648
    %v2500 = vor.u32 1.1754944e-38, %v2499
    %v2501 = vsel %vm2498, %v2500, %v2496
    %v2502 = vmul.f32 1.0, %v2501
    %v2503 = vrcp.pop %v2261
    %v2504 = vmul.f32 %v2261, %v2503
    %v2505 = vsub.f32 1.0, %v2504
    %v2506 = vmul.f32 %v2503, %v2505
    %v2507 = vadd.f32 %v2503, %v2506
    %vm2508 = vweird.f32 %v2261
    %vm2509 = vweird.f32 %v2503
    %vm2510 = vmor %vm2508, %vm2509
    %v2511 = vsel %vm2510, %v2503, %v2507
    %v2512 = vand.u32 2147483647, %v2261
    %vm2513 = vcmp.eq.f32.partialorder %v2512, 8.507059e+37
    %v2514 = vand.u32 %v2261, 2147483648
    %v2515 = vor.u32 1.1754944e-38, %v2514
    %v2516 = vsel %vm2513, %v2515, %v2511
    %v2517 = vmul.f32 1.0, %v2516
    %v2518 = vrcp.pop %v2262
    %v2519 = vmul.f32 %v2262, %v2518
    %v2520 = vsub.f32 1.0, %v2519
    %v2521 = vmul.f32 %v2518, %v2520
    %v2522 = vadd.f32 %v2518, %v2521
    %vm2523 = vweird.f32 %v2262
    %vm2524 = vweird.f32 %v2518
    %vm2525 = vmor %vm2523, %vm2524
    %v2526 = vsel %vm2525, %v2518, %v2522
    %v2527 = vand.u32 2147483647, %v2262
    %vm2528 = vcmp.eq.f32.partialorder %v2527, 8.507059e+37
    %v2529 = vand.u32 %v2262, 2147483648
    %v2530 = vor.u32 1.1754944e-38, %v2529
    %v2531 = vsel %vm2528, %v2530, %v2526
    %v2532 = vmul.f32 1.0, %v2531
    %v2533 = vrcp.pop %v2263
    %v2534 = vmul.f32 %v2263, %v2533
    %v2535 = vsub.f32 1.0, %v2534
    %v2536 = vmul.f32 %v2533, %v2535
    %v2537 = vadd.f32 %v2533, %v2536
    %vm2538 = vweird.f32 %v2263
    %vm2539 = vweird.f32 %v2533
    %vm2540 = vmor %vm2538, %vm2539
    %v2541 = vsel %vm2540, %v2533, %v2537
    %v2542 = vand.u32 2147483647, %v2263
    %vm2543 = vcmp.eq.f32.partialorder %v2542, 8.507059e+37
    %v2544 = vand.u32 %v2263, 2147483648
    %v2545 = vor.u32 1.1754944e-38, %v2544
    %v2546 = vsel %vm2543, %v2545, %v2541
    %v2547 = vmul.f32 1.0, %v2546
    %v2548 = vrcp.pop %v2264
    %v2549 = vmul.f32 %v2264, %v2548
    %v2550 = vsub.f32 1.0, %v2549
    %v2551 = vmul.f32 %v2548, %v2550
    %v2552 = vadd.f32 %v2548, %v2551
    %vm2553 = vweird.f32 %v2264
    %vm2554 = vweird.f32 %v2548
    %vm2555 = vmor %vm2553, %vm2554
    %v2556 = vsel %vm2555, %v2548, %v2552
    %v2557 = vand.u32 2147483647, %v2264
    %vm2558 = vcmp.eq.f32.partialorder %v2557, 8.507059e+37
    %v2559 = vand.u32 %v2264, 2147483648
    %v2560 = vor.u32 1.1754944e-38, %v2559
    %v2561 = vsel %vm2558, %v2560, %v2556
    %v2562 = vmul.f32 1.0, %v2561
    %v2563 = vrcp.pop %v2265
    %v2564 = vmul.f32 %v2265, %v2563
    %v2565 = vsub.f32 1.0, %v2564
    %v2566 = vmul.f32 %v2563, %v2565
    %v2567 = vadd.f32 %v2563, %v2566
    %vm2568 = vweird.f32 %v2265
    %vm2569 = vweird.f32 %v2563
    %vm2570 = vmor %vm2568, %vm2569
    %v2571 = vsel %vm2570, %v2563, %v2567
    %v2572 = vand.u32 2147483647, %v2265
    %vm2573 = vcmp.eq.f32.partialorder %v2572, 8.507059e+37
    %v2574 = vand.u32 %v2265, 2147483648
    %v2575 = vor.u32 1.1754944e-38, %v2574
    %v2576 = vsel %vm2573, %v2575, %v2571
    %v2577 = vmul.f32 1.0, %v2576
    %v2578 = vrcp.pop %v2266
    %v2579 = vmul.f32 %v2266, %v2578
    %v2580 = vsub.f32 1.0, %v2579
    %v2581 = vmul.f32 %v2578, %v2580
    %v2582 = vadd.f32 %v2578, %v2581
    %vm2583 = vweird.f32 %v2266
    %vm2584 = vweird.f32 %v2578
    %vm2585 = vmor %vm2583, %vm2584
    %v2586 = vsel %vm2585, %v2578, %v2582
    %v2587 = vand.u32 2147483647, %v2266
    %vm2588 = vcmp.eq.f32.partialorder %v2587, 8.507059e+37
    %v2589 = vand.u32 %v2266, 2147483648
    %v2590 = vor.u32 1.1754944e-38, %v2589
    %v2591 = vsel %vm2588, %v2590, %v2586
    %v2592 = vmul.f32 1.0, %v2591
    %v2593 = vrcp.pop %v2267
    %v2594 = vmul.f32 %v2267, %v2593
    %v2595 = vsub.f32 1.0, %v2594
    %v2596 = vmul.f32 %v2593, %v2595
    %v2597 = vadd.f32 %v2593, %v2596
    %vm2598 = vweird.f32 %v2267
    %vm2599 = vweird.f32 %v2593
    %vm2600 = vmor %vm2598, %vm2599
    %v2601 = vsel %vm2600, %v2593, %v2597
    %v2602 = vand.u32 2147483647, %v2267
    %vm2603 = vcmp.eq.f32.partialorder %v2602, 8.507059e+37
    %v2604 = vand.u32 %v2267, 2147483648
    %v2605 = vor.u32 1.1754944e-38, %v2604
    %v2606 = vsel %vm2603, %v2605, %v2601
    %v2607 = vmul.f32 1.0, %v2606
    %v2608 = vrcp.pop %v2268
    %v2609 = vmul.f32 %v2268, %v2608
    %v2610 = vsub.f32 1.0, %v2609
    %v2611 = vmul.f32 %v2608, %v2610
    %v2612 = vadd.f32 %v2608, %v2611
    %vm2613 = vweird.f32 %v2268
    %vm2614 = vweird.f32 %v2608
    %vm2615 = vmor %vm2613, %vm2614
    %v2616 = vsel %vm2615, %v2608, %v2612
    %v2617 = vand.u32 2147483647, %v2268
    %vm2618 = vcmp.eq.f32.partialorder %v2617, 8.507059e+37
    %v2619 = vand.u32 %v2268, 2147483648
    %v2620 = vor.u32 1.1754944e-38, %v2619
    %v2621 = vsel %vm2618, %v2620, %v2616
    %v2622 = vmul.f32 1.0, %v2621
    %v2623 = vrcp.pop %v2269
    %v2624 = vmul.f32 %v2269, %v2623
    %v2625 = vsub.f32 1.0, %v2624
    %v2626 = vmul.f32 %v2623, %v2625
    %v2627 = vadd.f32 %v2623, %v2626
    %vm2628 = vweird.f32 %v2269
    %vm2629 = vweird.f32 %v2623
    %vm2630 = vmor %vm2628, %vm2629
    %v2631 = vsel %vm2630, %v2623, %v2627
    %v2632 = vand.u32 2147483647, %v2269
    %vm2633 = vcmp.eq.f32.partialorder %v2632, 8.507059e+37
    %v2634 = vand.u32 %v2269, 2147483648
    %v2635 = vor.u32 1.1754944e-38, %v2634
    %v2636 = vsel %vm2633, %v2635, %v2631
    %v2637 = vmul.f32 1.0, %v2636
    %v2638 = vrcp.pop %v2270
    %v2639 = vmul.f32 %v2270, %v2638
    %v2640 = vsub.f32 1.0, %v2639
    %v2641 = vmul.f32 %v2638, %v2640
    %v2642 = vadd.f32 %v2638, %v2641
    %vm2643 = vweird.f32 %v2270
    %vm2644 = vweird.f32 %v2638
    %vm2645 = vmor %vm2643, %vm2644
    %v2646 = vsel %vm2645, %v2638, %v2642
    %v2647 = vand.u32 2147483647, %v2270
    %vm2648 = vcmp.eq.f32.partialorder %v2647, 8.507059e+37
    %v2649 = vand.u32 %v2270, 2147483648
    %v2650 = vor.u32 1.1754944e-38, %v2649
    %v2651 = vsel %vm2648, %v2650, %v2646
    %v2652 = vmul.f32 1.0, %v2651
    %v2653 = vrcp.pop %v2271
    %v2654 = vmul.f32 %v2271, %v2653
    %v2655 = vsub.f32 1.0, %v2654
    %v2656 = vmul.f32 %v2653, %v2655
    %v2657 = vadd.f32 %v2653, %v2656
    %vm2658 = vweird.f32 %v2271
    %vm2659 = vweird.f32 %v2653
    %vm2660 = vmor %vm2658, %vm2659
    %v2661 = vsel %vm2660, %v2653, %v2657
    %v2662 = vand.u32 2147483647, %v2271
    %vm2663 = vcmp.eq.f32.partialorder %v2662, 8.507059e+37
    %v2664 = vand.u32 %v2271, 2147483648
    %v2665 = vor.u32 1.1754944e-38, %v2664
    %v2666 = vsel %vm2663, %v2665, %v2661
    %v2667 = vmul.f32 1.0, %v2666
    %v2668 = vrcp.pop %v2272
    %v2669 = vmul.f32 %v2272, %v2668
    %v2670 = vsub.f32 1.0, %v2669
    %v2671 = vmul.f32 %v2668, %v2670
    %v2672 = vadd.f32 %v2668, %v2671
    %vm2673 = vweird.f32 %v2272
    %vm2674 = vweird.f32 %v2668
    %vm2675 = vmor %vm2673, %vm2674
    %v2676 = vsel %vm2675, %v2668, %v2672
    %v2677 = vand.u32 2147483647, %v2272
    %vm2678 = vcmp.eq.f32.partialorder %v2677, 8.507059e+37
    %v2679 = vand.u32 %v2272, 2147483648
    %v2680 = vor.u32 1.1754944e-38, %v2679
    %v2681 = vsel %vm2678, %v2680, %v2676
    %v2682 = vmul.f32 1.0, %v2681
    %v2683 = vrcp.pop %v2273
    %v2684 = vmul.f32 %v2273, %v2683
    %v2685 = vsub.f32 1.0, %v2684
    %v2686 = vmul.f32 %v2683, %v2685
    %v2687 = vadd.f32 %v2683, %v2686
    %vm2688 = vweird.f32 %v2273
    %vm2689 = vweird.f32 %v2683
    %vm2690 = vmor %vm2688, %vm2689
    %v2691 = vsel %vm2690, %v2683, %v2687
    %v2692 = vand.u32 2147483647, %v2273
    %vm2693 = vcmp.eq.f32.partialorder %v2692, 8.507059e+37
    %v2694 = vand.u32 %v2273, 2147483648
    %v2695 = vor.u32 1.1754944e-38, %v2694
    %v2696 = vsel %vm2693, %v2695, %v2691
    %v2697 = vmul.f32 1.0, %v2696
    %v2698 = vrcp.pop %v2274
    %v2699 = vmul.f32 %v2274, %v2698
    %v2700 = vsub.f32 1.0, %v2699
    %v2701 = vmul.f32 %v2698, %v2700
    %v2702 = vadd.f32 %v2698, %v2701
    %vm2703 = vweird.f32 %v2274
    %vm2704 = vweird.f32 %v2698
    %vm2705 = vmor %vm2703, %vm2704
    %v2706 = vsel %vm2705, %v2698, %v2702
    %v2707 = vand.u32 2147483647, %v2274
    %vm2708 = vcmp.eq.f32.partialorder %v2707, 8.507059e+37
    %v2709 = vand.u32 %v2274, 2147483648
    %v2710 = vor.u32 1.1754944e-38, %v2709
    %v2711 = vsel %vm2708, %v2710, %v2706
    %v2712 = vmul.f32 1.0, %v2711
    %v2713 = vrcp.pop %v2275
    %v2714 = vmul.f32 %v2275, %v2713
    %v2715 = vsub.f32 1.0, %v2714
    %v2716 = vmul.f32 %v2713, %v2715
    %v2717 = vadd.f32 %v2713, %v2716
    %vm2718 = vweird.f32 %v2275
    %vm2719 = vweird.f32 %v2713
    %vm2720 = vmor %vm2718, %vm2719
    %v2721 = vsel %vm2720, %v2713, %v2717
    %v2722 = vand.u32 2147483647, %v2275
    %vm2723 = vcmp.eq.f32.partialorder %v2722, 8.507059e+37
    %v2724 = vand.u32 %v2275, 2147483648
    %v2725 = vor.u32 1.1754944e-38, %v2724
    %v2726 = vsel %vm2723, %v2725, %v2721
    %v2727 = vmul.f32 1.0, %v2726
    %v2728 = vrcp.pop %v2276
    %v2729 = vmul.f32 %v2276, %v2728
    %v2730 = vsub.f32 1.0, %v2729
    %v2731 = vmul.f32 %v2728, %v2730
    %v2732 = vadd.f32 %v2728, %v2731
    %vm2733 = vweird.f32 %v2276
    %vm2734 = vweird.f32 %v2728
    %vm2735 = vmor %vm2733, %vm2734
    %v2736 = vsel %vm2735, %v2728, %v2732
    %v2737 = vand.u32 2147483647, %v2276
    %vm2738 = vcmp.eq.f32.partialorder %v2737, 8.507059e+37
    %v2739 = vand.u32 %v2276, 2147483648
    %v2740 = vor.u32 1.1754944e-38, %v2739
    %v2741 = vsel %vm2738, %v2740, %v2736
    %v2742 = vmul.f32 1.0, %v2741
    %v2743 = vrcp.pop %v2277
    %v2744 = vmul.f32 %v2277, %v2743
    %v2745 = vsub.f32 1.0, %v2744
    %v2746 = vmul.f32 %v2743, %v2745
    %v2747 = vadd.f32 %v2743, %v2746
    %vm2748 = vweird.f32 %v2277
    %vm2749 = vweird.f32 %v2743
    %vm2750 = vmor %vm2748, %vm2749
    %v2751 = vsel %vm2750, %v2743, %v2747
    %v2752 = vand.u32 2147483647, %v2277
    %vm2753 = vcmp.eq.f32.partialorder %v2752, 8.507059e+37
    %v2754 = vand.u32 %v2277, 2147483648
    %v2755 = vor.u32 1.1754944e-38, %v2754
    %v2756 = vsel %vm2753, %v2755, %v2751
    %v2757 = vmul.f32 1.0, %v2756
    %v2758 = vmul.f32 %v2071, %v2292
    %v2759 = vmul.f32 %v2073, %v2307
    %v2760 = vmul.f32 %v2076, %v2322
    %v2761 = vmul.f32 %v2078, %v2337
    %v2762 = vmul.f32 %v2081, %v2352
    %v2763 = vmul.f32 %v2083, %v2367
    %v2764 = vmul.f32 %v2086, %v2382
    %v2765 = vmul.f32 %v2088, %v2397
    %v2766 = vmul.f32 %v2091, %v2412
    %v2767 = vmul.f32 %v2093, %v2427
    %v2768 = vmul.f32 %v2096, %v2442
    %v2769 = vmul.f32 %v2098, %v2457
    %v2770 = vmul.f32 %v2101, %v2472
    %v2771 = vmul.f32 %v2103, %v2487
    %v2772 = vmul.f32 %v2106, %v2502
    %v2773 = vmul.f32 %v2108, %v2517
    %v2774 = vmul.f32 %v2111, %v2532
    %v2775 = vmul.f32 %v2113, %v2547
    %v2776 = vmul.f32 %v2116, %v2562
    %v2777 = vmul.f32 %v2118, %v2577
    %v2778 = vmul.f32 %v2121, %v2592
    %v2779 = vmul.f32 %v2123, %v2607
    %v2780 = vmul.f32 %v2126, %v2622
    %v2781 = vmul.f32 %v2128, %v2637
    %v2782 = vmul.f32 %v2131, %v2652
    %v2783 = vmul.f32 %v2133, %v2667
    %v2784 = vmul.f32 %v2136, %v2682
    %v2785 = vmul.f32 %v2138, %v2697
    %v2786 = vmul.f32 %v2141, %v2712
    %v2787 = vmul.f32 %v2143, %v2727
    %v2788 = vmul.f32 %v2146, %v2742
    %v2789 = vmul.f32 %v2148, %v2757
    %v2790 = vsel %vm1712, %v2758, 0.0
    %v2791 = vsel %vm1712, %v2759, 0.0
    %v2792 = vadd.f32 %v2790, %v2791
    %v2793 = vsel %vm1712, %v2760, 0.0
    %v2794 = vsel %vm1712, %v2761, 0.0
    %v2795 = vadd.f32 %v2793, %v2794
    %v2796 = vsel %vm1712, %v2762, 0.0
    %v2797 = vsel %vm1712, %v2763, 0.0
    %v2798 = vadd.f32 %v2796, %v2797
    %v2799 = vsel %vm1712, %v2764, 0.0
    %v2800 = vsel %vm1712, %v2765, 0.0
    %v2801 = vadd.f32 %v2799, %v2800
    %v2802 = vsel %vm1712, %v2766, 0.0
    %v2803 = vsel %vm1712, %v2767, 0.0
    %v2804 = vadd.f32 %v2802, %v2803
    %v2805 = vsel %vm1712, %v2768, 0.0
    %v2806 = vsel %vm1712, %v2769, 0.0
    %v2807 = vadd.f32 %v2805, %v2806
    %v2808 = vsel %vm1712, %v2770, 0.0
    %v2809 = vsel %vm1712, %v2771, 0.0
    %v2810 = vadd.f32 %v2808, %v2809
    %v2811 = vsel %vm1712, %v2772, 0.0
    %v2812 = vsel %vm1712, %v2773, 0.0
    %v2813 = vadd.f32 %v2811, %v2812
    %v2814 = vsel %vm1712, %v2774, 0.0
    %v2815 = vsel %vm1712, %v2775, 0.0
    %v2816 = vadd.f32 %v2814, %v2815
    %v2817 = vsel %vm1712, %v2776, 0.0
    %v2818 = vsel %vm1712, %v2777, 0.0
    %v2819 = vadd.f32 %v2817, %v2818
    %v2820 = vsel %vm1712, %v2778, 0.0
    %v2821 = vsel %vm1712, %v2779, 0.0
    %v2822 = vadd.f32 %v2820, %v2821
    %v2823 = vsel %vm1712, %v2780, 0.0
    %v2824 = vsel %vm1712, %v2781, 0.0
    %v2825 = vadd.f32 %v2823, %v2824
    %v2826 = vsel %vm1712, %v2782, 0.0
    %v2827 = vsel %vm1712, %v2783, 0.0
    %v2828 = vadd.f32 %v2826, %v2827
    %v2829 = vsel %vm1712, %v2784, 0.0
    %v2830 = vsel %vm1712, %v2785, 0.0
    %v2831 = vadd.f32 %v2829, %v2830
    %v2832 = vsel %vm1712, %v2786, 0.0
    %v2833 = vsel %vm1712, %v2787, 0.0
    %v2834 = vadd.f32 %v2832, %v2833
    %v2835 = vsel %vm1712, %v2788, 0.0
    %v2836 = vsel %vm1712, %v2789, 0.0
    %v2837 = vadd.f32 %v2835, %v2836
    %v2838 = vrcp.pop 2.0
    %v2839 = vmul.f32 2.0, %v2838
    %v2840 = vsub.f32 1.0, %v2839
    %v2841 = vmul.f32 %v2838, %v2840
    %v2842 = vadd.f32 %v2838, %v2841
    %vm2843 = vweird.f32 %v2838
    %v2844 = vsel %vm2843, %v2838, %v2842
    %v2845 = vmul.f32 %v2792, %v2844
    %v2846 = vmul.f32 %v2795, %v2844
    %v2847 = vmul.f32 %v2798, %v2844
    %v2848 = vmul.f32 %v2801, %v2844
    %v2849 = vmul.f32 %v2804, %v2844
    %v2850 = vmul.f32 %v2807, %v2844
    %v2851 = vmul.f32 %v2810, %v2844
    %v2852 = vmul.f32 %v2813, %v2844
    %v2853 = vmul.f32 %v2816, %v2844
    %v2854 = vmul.f32 %v2819, %v2844
    %v2855 = vmul.f32 %v2822, %v2844
    %v2856 = vmul.f32 %v2825, %v2844
    %v2857 = vmul.f32 %v2828, %v2844
    %v2858 = vmul.f32 %v2831, %v2844
    %v2859 = vmul.f32 %v2834, %v2844
    %v2860 = vmul.f32 %v2837, %v2844
    %2861 = vst.msk [vmem:[#allocation3] sm:$0xff] %vm1712, %v2845
    %2862 = vst.msk [vmem:[#allocation3 + $0x8] sm:$0xff] %vm1712, %v2846
    %2863 = vst.msk [vmem:[#allocation3 + $0x10] sm:$0xff] %vm1712, %v2847
    %2864 = vst.msk [vmem:[#allocation3 + $0x18] sm:$0xff] %vm1712, %v2848
    %2865 = vst.msk [vmem:[#allocation3 + $0x20] sm:$0xff] %vm1712, %v2849
    %2866 = vst.msk [vmem:[#allocation3 + $0x28] sm:$0xff] %vm1712, %v2850
    %2867 = vst.msk [vmem:[#allocation3 + $0x30] sm:$0xff] %vm1712, %v2851
    %2868 = vst.msk [vmem:[#allocation3 + $0x38] sm:$0xff] %vm1712, %v2852
    %2869 = vst.msk [vmem:[#allocation3 + $0x40] sm:$0xff] %vm1712, %v2853
    %2870 = vst.msk [vmem:[#allocation3 + $0x48] sm:$0xff] %vm1712, %v2854
    %2871 = vst.msk [vmem:[#allocation3 + $0x50] sm:$0xff] %vm1712, %v2855
    %2872 = vst.msk [vmem:[#allocation3 + $0x58] sm:$0xff] %vm1712, %v2856
    %2873 = vst.msk [vmem:[#allocation3 + $0x60] sm:$0xff] %vm1712, %v2857
    %2874 = vst.msk [vmem:[#allocation3 + $0x68] sm:$0xff] %vm1712, %v2858
    %2875 = vst.msk [vmem:[#allocation3 + $0x70] sm:$0xff] %vm1712, %v2859
    %2876 = vst.msk [vmem:[#allocation3 + $0x78] sm:$0xff] %vm1712, %v2860
    // Predicated region
    $region30: #{tpu_custom_call.1} parent=1 // pred_check
      _
    $region31: #{tpu_custom_call.1} parent=1 // pred_check_branch
      %2878 = sbr.rel (0) target = $region33
    $region32: #{tpu_custom_call.1} parent=1 // pred_region
      %2880 = vsyncadd [#allocation4], 0
      %s2881 = sshll.u32 [#allocation3], 4
      %s2882 = int_to_ptr.vmem [resolvable:$true] %s2881
      %s2883 = sshll.u32 %s7, 4
      %s2884 = int_to_ptr.hbm [resolvable:$true] %s2883
      %2889 = dma.vmem_to_hbm [thread:$0]  %s2882, 2048, %s2884, [#allocation4], 128, 128, 8
    $region33: #{tpu_custom_call.1} parent=1 // pred_fallthru
      _
    // Predicated region
    $region34: #{tpu_custom_call.1} parent=1 // pred_check
      _
    $region35: #{tpu_custom_call.1} parent=1 // pred_check_branch
      %2891 = sbr.rel (0) target = $region37
    $region36: #{tpu_custom_call.1} parent=1 // pred_region
      %2893 = dma.done [#allocation4], 2048
    $region37: #{tpu_custom_call.1} parent=1 // pred_fallthru
      _
    %2894 = vsyncpa [#allocation4], 1

</llo_original>
